<compile_context>
chip_gen: v6e
topology: v6e:2x2x1
jax: 0.10.0
libtpu: 0.0.40
codegen_flags: <defaults>
</compile_context>

<pallas_src>
import functools

import numpy as np
import jax
import jax.numpy as jnp
from jax.experimental import pallas as pl
from jax.experimental.pallas import tpu as pltpu


# ----------------------------------------------------------------------------
# Host-precomputed constants
# ----------------------------------------------------------------------------
def _host_constants(H, W, with_expansion):
    """Returns (P, Bc, R, R2) numpy float32 arrays.

    P  : (2, 2W, 2W)  block-real, row-duplicated W-DFT so that
                      P[0] @ [Xr^T; Xi^T] -> row 2i+c = Re(X @ F_W)^T[i, :]
                      P[1] @ [Xr^T; Xi^T] -> row 2i+c = Im(X @ F_W)^T[i, :]
    Bc : (2, 2W, W)   interleaved inverse-DFT row factors
                      Bc[0][2i+0]= IFWr[i], Bc[0][2i+1]= IFWi[i]
                      Bc[1][2i+0]=-IFWi[i], Bc[1][2i+1]= IFWr[i]
    R  : (H, H*W)     0/1 expansion: (A @ R)[k, h*W+w] = A[k, h]   (small-W path only)
    R2 : (W, H*W)     0/1 expansion: (B @ R2)[k, h*W+w] = B[k, w]  (small-W path only)
    """
    idx = np.arange(W)
    ang = 2.0 * np.pi * np.outer(idx, idx) / W
    fwr = np.cos(ang)            # Re exp(-i ang)   (forward DFT, unnormalized)
    fwi = -np.sin(ang)           # Im exp(-i ang)
    ifwr = np.cos(ang) / W       # Re exp(+i ang)/W (inverse DFT)
    ifwi = np.sin(ang) / W       # Im exp(+i ang)/W

    dup = np.repeat(np.eye(W), 2, axis=0)                      # (2W, W)
    p1 = np.concatenate([dup @ fwr, -(dup @ fwi)], axis=1)     # (2W, 2W)
    p2 = np.concatenate([dup @ fwi, dup @ fwr], axis=1)
    p = np.stack([p1, p2]).astype(np.float32)

    b1 = np.empty((2 * W, W), np.float64)
    b2 = np.empty((2 * W, W), np.float64)
    b1[0::2], b1[1::2] = ifwr, ifwi
    b2[0::2], b2[1::2] = -ifwi, ifwr
    bc = np.stack([b1, b2]).astype(np.float32)

    if not with_expansion:
        return p, bc, None, None
    r = np.repeat(np.eye(H, dtype=np.float32), W, axis=1)      # (H, H*W)
    r2 = np.tile(np.eye(W, dtype=np.float32), (1, H))          # (W, H*W)
    return p, bc, r, r2


def _pick_col_chunk(H, W, target_bytes):
    """Largest column-chunk (multiple of 4, divides W) with <= target_bytes out block.

    Prefers wc <= W/2 so every batch has >= 2 chunks (balanced megacore split on v7x).
    target_bytes ~4 MiB keeps out+emb double buffers well inside scoped VMEM on all
    generations (use ~8 MiB on v5e/v6e if emb is absent and step overhead shows up).
    """
    cands = [wc for wc in range(4, W + 1, 4) if W % wc == 0]
    if not cands:
        return W
    multi = [wc for wc in cands if 2 * wc <= W] or cands
    fitting = [wc for wc in multi if 2 * wc * H * W * 4 <= target_bytes]
    return max(fitting) if fitting else min(multi)


# ----------------------------------------------------------------------------
# Kernels
# ----------------------------------------------------------------------------
def _spectral_kernel_bcast(n_spec, xt_ref, p_ref, bc_ref, madd_ref, emb_ref, out_ref):
    """Production path (4-D (1, c_blk, H, W) blocks, no R/R2 matmuls)."""
    j = pl.program_id(1)   # channel-chunk index (spectral chunks, then embedding chunks)

    @pl.when(j < n_spec)
    def _spectral_chunk():
        xt = xt_ref[0]                      # (2W, H)  = [X^T real ; X^T imag]
        # Tiny column-DFT matmuls; rows 2i+c of a1/a2 hold Re/Im (X@Fw)^T[i, :].
        a1 = jnp.dot(p_ref[0], xt, preferred_element_type=jnp.float32)   # (c_blk, H)
        a2 = jnp.dot(p_ref[1], xt, preferred_element_type=jnp.float32)   # (c_blk, H)
        # Per-channel outer products as VPU broadcasts: lane-broadcast of a1/a2 over w,
        # sublane-broadcast of the inverse-DFT rows (and the mask add) over h.
        out_ref[0] = (a1[:, :, None] * bc_ref[0][:, None, :]
                      + a2[:, :, None] * bc_ref[1][:, None, :]
                      + madd_ref[0][:, None, :])

    @pl.when(j >= n_spec)
    def _embedding_chunk():
        # Fused concat: copy the mask_embedding chunk into the tail channels.
        out_ref[0] = emb_ref[0]


def _spectral_kernel_flat(n_spec, xt_ref, p_ref, bc_ref, r_ref, r2_ref,
                          madd_ref, emb_ref, out_ref):
    """Small-W path (W < 128): flattened (c_blk, H*W) lane-dense output; R/R2 are tiny."""
    j = pl.program_id(1)

    @pl.when(j < n_spec)
    def _spectral_chunk():
        def dot(a, b):
            return jnp.dot(a, b, preferred_element_type=jnp.float32)

        xt = xt_ref[0]                      # (2W, H)
        a1 = dot(p_ref[0], xt)              # (c_blk, H)
        a2 = dot(p_ref[1], xt)
        e1 = dot(a1, r_ref[...])            # (c_blk, H*W): broadcast over w
        e2 = dot(a2, r_ref[...])
        f1 = dot(bc_ref[0], r2_ref[...])    # (c_blk, H*W): IFW factor tiled over h
        f2 = dot(bc_ref[1], r2_ref[...])
        out_ref[0] = e1 * f1 + e2 * f2 + madd_ref[0]

    @pl.when(j >= n_spec)
    def _embedding_chunk():
        out_ref[0] = emb_ref[0]


# ----------------------------------------------------------------------------
# Wrapper
# ----------------------------------------------------------------------------
def spectral_map_decomposition(reconstructed_image, mask_embedding=None, mask=None,
                               col_chunk=None, chunk_bytes=4 << 20, force_layout=None):
    x = jnp.asarray(reconstructed_image, jnp.float32)
    B, C, H, W = x.shape
    assert C == 2, "expected (real, imag) channel pair"
    assert W % 4 == 0, "width must be a multiple of 4 for 8-aligned channel chunks"

    # Layout gate: 4-D blocks once W fills the 128 lanes (unmasked vst); below that use
    # the flattened lane-dense layout, whose tiny R/R2 constants are only (H+W)*H*W*4 B.
    if force_layout == "bcast":
        use_bcast = True
    elif force_layout == "flat":
        use_bcast = False
    else:
        use_bcast = (W >= 128) or ((H + W) * H * W * 4 > (4 << 20))

    wc = col_chunk if col_chunk is not None else _pick_col_chunk(H, W, chunk_bytes)
    assert W % wc == 0 and wc % 4 == 0, f"bad column chunk {wc} for W={W}"
    c_blk = 2 * wc                      # output channels per chunk (multiple of 8)
    n_spec = W // wc
    hw = H * W

    p_np, bc_np, r_np, r2_np = _host_constants(H, W, with_expansion=not use_bcast)
    p = jnp.asarray(p_np)
    bc = jnp.asarray(bc_np)

    # X^T stacked real/imag: rows [0:W) = Re(X)^T, rows [W:2W) = Im(X)^T.
    xt = jnp.transpose(x, (0, 1, 3, 2)).reshape(B, 2 * W, H)

    # Per-output-channel additive mask: channel k = 2*i + c receives mask[..., k % W]
    # (the literal torch .view reinterpretation quirk of the reference module).
    if mask is None:
        madd2 = jnp.zeros((B, 2 * W), jnp.float32)
    else:
        mvec = jnp.asarray(mask, jnp.float32).reshape(B, W)
        madd2 = jnp.tile(mvec, (1, 2))

    if mask_embedding is not None:
        emb = jnp.asarray(mask_embedding, jnp.float32)
        E = emb.shape[1]
        n_emb = -(-E // c_blk)          # cdiv
        pad = n_emb * c_blk - E
        if pad:
            # Pad the embedding source so its blocks are full; the (partial) final output
            # block is masked on writeback by Pallas (cheap: one chunk per batch).
            emb = jnp.pad(emb, ((0, 0), (0, pad), (0, 0), (0, 0)))
    else:
        E, n_emb = 0, 0
        emb = jnp.zeros((1, c_blk, H, W), jnp.float32)   # dummy, never selected

    c_total = 2 * W + E
    n_chunks = n_spec + n_emb
    clamp = lambda j: jnp.minimum(j, n_spec - 1)

    compiler_params = pltpu.CompilerParams(
        dimension_semantics=("parallel", "parallel"),
        # ~17 MiB live at H=W=128 (4 MiB out + 4 MiB emb, double-buffered, + small inputs).
        # 32 MiB raises v5e's 16 MiB default and matches v6e/v7x defaults (v7x TC = 64 MiB).
        vmem_limit_bytes=32 * 1024 * 1024,
    )

    if use_bcast:
        # Mask add as a constant-over-w slab so it is a native sublane-broadcast in-kernel.
        madd = jnp.broadcast_to(madd2[:, :, None], (B, 2 * W, W))
        if n_emb:
            # During the spectral phase this keeps embedding chunk 0 resident, acting as a
            # prefetch for the first embedding chunk (revisit => no second DMA).
            emb_map = lambda b, j: (b, jnp.maximum(j - n_spec, 0), 0, 0)
        else:
            emb_map = lambda b, j: (0, 0, 0, 0)

        kernel = functools.partial(_spectral_kernel_bcast, n_spec)
        return pl.pallas_call(
            kernel,
            out_shape=jax.ShapeDtypeStruct((B, c_total, H, W), jnp.float32),
            grid_spec=pltpu.PrefetchScalarGridSpec(
                num_scalar_prefetch=0,
                grid=(B, n_chunks),
                in_specs=[
                    pl.BlockSpec((1, 2 * W, H), lambda b, j: (b, 0, 0)),            # xt
                    pl.BlockSpec((2, c_blk, 2 * W), lambda b, j: (0, clamp(j), 0)),  # P rows
                    pl.BlockSpec((2, c_blk, W), lambda b, j: (0, clamp(j), 0)),      # Bc rows
                    pl.BlockSpec((1, c_blk, W), lambda b, j: (b, clamp(j), 0)),      # mask add
                    pl.BlockSpec((1, c_blk, H, W), emb_map),                         # embedding
                ],
                out_specs=pl.BlockSpec((1, c_blk, H, W), lambda b, j: (b, j, 0, 0)),
            ),
            compiler_params=compiler_params,
        )(xt, p, bc, madd, emb)

    # ---- small-W flattened path (lane-dense (c_blk, H*W) stores) ----
    r = jnp.asarray(r_np)
    r2 = jnp.asarray(r2_np)
    madd = madd2[:, :, None]                                   # (B, 2W, 1)
    emb_flat = emb.reshape(emb.shape[0], emb.shape[1], hw)
    if n_emb:
        emb_map = lambda b, j: (b, jnp.maximum(j - n_spec, 0), 0)
    else:
        emb_map = lambda b, j: (0, 0, 0)

    kernel = functools.partial(_spectral_kernel_flat, n_spec)
    out_flat = pl.pallas_call(
        kernel,
        out_shape=jax.ShapeDtypeStruct((B, c_total, hw), jnp.float32),
        grid_spec=pltpu.PrefetchScalarGridSpec(
            num_scalar_prefetch=0,
            grid=(B, n_chunks),
            in_specs=[
                pl.BlockSpec((1, 2 * W, H), lambda b, j: (b, 0, 0)),            # xt
                pl.BlockSpec((2, c_blk, 2 * W), lambda b, j: (0, clamp(j), 0)),  # P rows
                pl.BlockSpec((2, c_blk, W), lambda b, j: (0, clamp(j), 0)),      # Bc rows
                pl.BlockSpec((H, hw), lambda b, j: (0, 0)),                      # R (tiny here)
                pl.BlockSpec((W, hw), lambda b, j: (0, 0)),                      # R2 (tiny here)
                pl.BlockSpec((1, c_blk, 1), lambda b, j: (b, clamp(j), 0)),      # mask add
                pl.BlockSpec((1, c_blk, hw), emb_map),                           # embedding
            ],
            out_specs=pl.BlockSpec((1, c_blk, hw), lambda b, j: (b, j, 0)),
        ),
        compiler_params=compiler_params,
    )(xt, p, bc, r, r2, madd, emb_flat)

    # (B, C, H*W) has identical memory order to (B, C, H, W): free reshape back.
    return out_flat.reshape(B, c_total, H, W)


# ----------------------------------------------------------------------------
# Pure-JAX reference (literal mirror of the PyTorch forward)
# ----------------------------------------------------------------------------
def _reference(x, mask_embedding, mask):
    B, _, H, W = x.shape
    xc = x[:, 0].astype(jnp.complex64) + 1j * x[:, 1].astype(jnp.complex64)
    k = jnp.fft.fftn(xc, axes=(-2, -1), norm="backward")
    cols = []
    for i in range(W):
        km = jnp.zeros_like(k).at[..., i].set(k[..., i])
        s = jnp.fft.ifftn(km, axes=(-2, -1), norm="backward")
        cols.append(jnp.stack([s.real, s.imag], axis=1))        # [B, 2, H, W]
    sep = jnp.stack(cols, axis=1)                                # [B, W, 2, H, W]
    sep = sep.reshape(B, 2, W, H, W)                             # torch .view reinterpret
    if mask is not None:
        sep = sep + jnp.transpose(mask, (0, 3, 1, 2))[:, None].astype(sep.dtype)
    sep = sep.reshape(B, 2 * W, H, W)
    if mask_embedding is not None:
        sep = jnp.concatenate([sep, mask_embedding], axis=1)
    return sep.astype(jnp.float32)


if __name__ == "__main__":
    B, H, W, E = 2, 16, 16, 6
    key = jax.random.PRNGKey(0)
    k1, k2, k3 = jax.random.split(key, 3)
    reconstructed_image = jax.random.normal(k1, (B, 2, H, W), dtype=jnp.float32)
    mask_embedding = jax.random.normal(k2, (B, E, H, W), dtype=jnp.float32)
    mask = (jax.random.uniform(k3, (B, 1, 1, W)) < 0.5).astype(jnp.float32)

    ref = _reference(reconstructed_image, mask_embedding, mask)

    # (1) default small-W layout (flattened lane-dense stores), 2 spectral + 1 emb chunks.
    out_flat = jax.block_until_ready(
        spectral_map_decomposition(reconstructed_image, mask_embedding, mask, col_chunk=8))
    assert out_flat.shape == (B, 2 * W + E, H, W), out_flat.shape
    err_flat = float(jnp.max(jnp.abs(out_flat - ref)))

    # (2) production broadcast path (4-D blocks, no R/R2), forced at the small test size.
    out_bcast = jax.block_until_ready(
        spectral_map_decomposition(reconstructed_image, mask_embedding, mask,
                                   col_chunk=8, force_layout="bcast"))
    assert out_bcast.shape == (B, 2 * W + E, H, W), out_bcast.shape
    err_bcast = float(jnp.max(jnp.abs(out_bcast - ref)))

    # (3) broadcast path without mask / mask_embedding (optional-input branches).
    ref_plain = _reference(reconstructed_image, None, None)
    out_plain = jax.block_until_ready(
        spectral_map_decomposition(reconstructed_image, None, None, force_layout="bcast"))
    assert out_plain.shape == (B, 2 * W, H, W), out_plain.shape
    err_plain = float(jnp.max(jnp.abs(out_plain - ref_plain)))

    for name, err in (("flat", err_flat), ("bcast", err_bcast), ("bcast_plain", err_plain)):
        if err > 2e-2:
            raise AssertionError(f"{name}: mismatch vs reference, max abs err = {err}")
    print("KERNEL_OK")
</pallas_src>

<mosaic_0001>
module attributes {stable_mosaic.version = 11 : i64} {
  func.func @_spectral_kernel_flat(%arg0: i32, %arg1: i32, %arg2: memref<1x32x16xf32, #tpu.memory_space<vmem>>, %arg3: memref<2x16x32xf32, #tpu.memory_space<vmem>>, %arg4: memref<2x16x16xf32, #tpu.memory_space<vmem>>, %arg5: memref<16x256xf32, #tpu.memory_space<vmem>>, %arg6: memref<16x256xf32, #tpu.memory_space<vmem>>, %arg7: memref<1x16x1xf32, #tpu.memory_space<vmem>>, %arg8: memref<1x16x256xf32, #tpu.memory_space<vmem>>, %arg9: memref<1x16x256xf32, #tpu.memory_space<vmem>>) attributes {dimension_semantics = [#tpu.dimension_semantics<parallel>, #tpu.dimension_semantics<parallel>], iteration_bounds = array<i64: 2, 3>, scalar_prefetch = 0 : i64, scratch_operands = 0 : i64, tpu.core_type = #tpu.core_type<tc>, window_params = [{transform_indices = @transform_0, window_bounds = array<i64: 1, 32, 16>}, {transform_indices = @transform_1, window_bounds = array<i64: 2, 16, 32>}, {transform_indices = @transform_2, window_bounds = array<i64: 2, 16, 16>}, {pipeline_mode = #tpu.pipeline_mode<synchronous>, transform_indices = @transform_3, window_bounds = array<i64: 16, 256>}, {pipeline_mode = #tpu.pipeline_mode<synchronous>, transform_indices = @transform_4, window_bounds = array<i64: 16, 256>}, {transform_indices = @transform_5, window_bounds = array<i64: 1, 16, 1>}, {transform_indices = @transform_6, window_bounds = array<i64: 1, 16, 256>}, {transform_indices = @transform_7, window_bounds = array<i64: 1, 16, 256>}]} {
    %c2_i32 = arith.constant 2 : i32
    %0 = arith.cmpi slt, %arg1, %c2_i32 : i32
    %1 = arith.extui %0 : i1 to i32
    %c0_i32 = arith.constant 0 : i32
    %2 = arith.cmpi ne, %1, %c0_i32 : i32
    scf.if %2 {
      %c0 = arith.constant 0 : index
      %c0_2 = arith.constant 0 : index
      %c0_3 = arith.constant 0 : index
      %6 = vector.load %arg2[%c0, %c0_2, %c0_3] : memref<1x32x16xf32, #tpu.memory_space<vmem>>, vector<1x32x16xf32>
      %7 = vector.shape_cast %6 : vector<1x32x16xf32> to vector<32x16xf32>
      %c0_4 = arith.constant 0 : index
      %c0_5 = arith.constant 0 : index
      %c0_6 = arith.constant 0 : index
      %8 = vector.load %arg3[%c0_4, %c0_5, %c0_6] : memref<2x16x32xf32, #tpu.memory_space<vmem>>, vector<1x16x32xf32>
      %9 = vector.shape_cast %8 : vector<1x16x32xf32> to vector<16x32xf32>
      %cst = arith.constant dense<0.000000e+00> : vector<16x16xf32>
      %10 = tpu.matmul %9, %7, %cst {dimension_numbers = #tpu.dot_dimension_numbers<[1], [0], [0], [1], [0, 0, 1, 1], [], []>} : vector<16x32xf32>, vector<32x16xf32>, vector<16x16xf32> -> vector<16x16xf32>
      %c1 = arith.constant 1 : index
      %c0_7 = arith.constant 0 : index
      %c0_8 = arith.constant 0 : index
      %11 = vector.load %arg3[%c1, %c0_7, %c0_8] : memref<2x16x32xf32, #tpu.memory_space<vmem>>, vector<1x16x32xf32>
      %12 = vector.shape_cast %11 : vector<1x16x32xf32> to vector<16x32xf32>
      %cst_9 = arith.constant dense<0.000000e+00> : vector<16x16xf32>
      %13 = tpu.matmul %12, %7, %cst_9 {dimension_numbers = #tpu.dot_dimension_numbers<[1], [0], [0], [1], [0, 0, 1, 1], [], []>} : vector<16x32xf32>, vector<32x16xf32>, vector<16x16xf32> -> vector<16x16xf32>
      %c0_10 = arith.constant 0 : index
      %c0_11 = arith.constant 0 : index
      %14 = vector.load %arg5[%c0_10, %c0_11] : memref<16x256xf32, #tpu.memory_space<vmem>>, vector<16x256xf32>
      %cst_12 = arith.constant dense<0.000000e+00> : vector<16x256xf32>
      %15 = tpu.matmul %10, %14, %cst_12 {dimension_numbers = #tpu.dot_dimension_numbers<[1], [0], [0], [1], [0, 0, 1, 1], [], []>} : vector<16x16xf32>, vector<16x256xf32>, vector<16x256xf32> -> vector<16x256xf32>
      %c0_13 = arith.constant 0 : index
      %c0_14 = arith.constant 0 : index
      %16 = vector.load %arg5[%c0_13, %c0_14] : memref<16x256xf32, #tpu.memory_space<vmem>>, vector<16x256xf32>
      %cst_15 = arith.constant dense<0.000000e+00> : vector<16x256xf32>
      %17 = tpu.matmul %13, %16, %cst_15 {dimension_numbers = #tpu.dot_dimension_numbers<[1], [0], [0], [1], [0, 0, 1, 1], [], []>} : vector<16x16xf32>, vector<16x256xf32>, vector<16x256xf32> -> vector<16x256xf32>
      %c0_16 = arith.constant 0 : index
      %c0_17 = arith.constant 0 : index
      %c0_18 = arith.constant 0 : index
      %18 = vector.load %arg4[%c0_16, %c0_17, %c0_18] : memref<2x16x16xf32, #tpu.memory_space<vmem>>, vector<1x16x16xf32>
      %19 = vector.shape_cast %18 : vector<1x16x16xf32> to vector<16x16xf32>
      %c0_19 = arith.constant 0 : index
      %c0_20 = arith.constant 0 : index
      %20 = vector.load %arg6[%c0_19, %c0_20] : memref<16x256xf32, #tpu.memory_space<vmem>>, vector<16x256xf32>
      %cst_21 = arith.constant dense<0.000000e+00> : vector<16x256xf32>
      %21 = tpu.matmul %19, %20, %cst_21 {dimension_numbers = #tpu.dot_dimension_numbers<[1], [0], [0], [1], [0, 0, 1, 1], [], []>} : vector<16x16xf32>, vector<16x256xf32>, vector<16x256xf32> -> vector<16x256xf32>
      %c1_22 = arith.constant 1 : index
      %c0_23 = arith.constant 0 : index
      %c0_24 = arith.constant 0 : index
      %22 = vector.load %arg4[%c1_22, %c0_23, %c0_24] : memref<2x16x16xf32, #tpu.memory_space<vmem>>, vector<1x16x16xf32>
      %23 = vector.shape_cast %22 : vector<1x16x16xf32> to vector<16x16xf32>
      %c0_25 = arith.constant 0 : index
      %c0_26 = arith.constant 0 : index
      %24 = vector.load %arg6[%c0_25, %c0_26] : memref<16x256xf32, #tpu.memory_space<vmem>>, vector<16x256xf32>
      %cst_27 = arith.constant dense<0.000000e+00> : vector<16x256xf32>
      %25 = tpu.matmul %23, %24, %cst_27 {dimension_numbers = #tpu.dot_dimension_numbers<[1], [0], [0], [1], [0, 0, 1, 1], [], []>} : vector<16x16xf32>, vector<16x256xf32>, vector<16x256xf32> -> vector<16x256xf32>
      %26 = arith.mulf %15, %21 : vector<16x256xf32>
      %27 = arith.mulf %17, %25 : vector<16x256xf32>
      %28 = arith.addf %26, %27 : vector<16x256xf32>
      %c0_28 = arith.constant 0 : index
      %c0_29 = arith.constant 0 : index
      %c0_30 = arith.constant 0 : index
      %29 = vector.load %arg7[%c0_28, %c0_29, %c0_30] : memref<1x16x1xf32, #tpu.memory_space<vmem>>, vector<1x16x1xf32>
      %30 = vector.shape_cast %29 : vector<1x16x1xf32> to vector<16x1xf32>
      %31 = vector.broadcast %30 : vector<16x1xf32> to vector<16x256xf32>
      %32 = arith.addf %28, %31 : vector<16x256xf32>
      %c0_31 = arith.constant 0 : index
      %c0_32 = arith.constant 0 : index
      %c0_33 = arith.constant 0 : index
      %33 = vector.load %arg9[%c0_31, %c0_32, %c0_33] : memref<1x16x256xf32, #tpu.memory_space<vmem>>, vector<1x16x256xf32>
      %34 = vector.shape_cast %33 : vector<1x16x256xf32> to vector<16x256xf32>
      %35 = vector.shape_cast %32 : vector<16x256xf32> to vector<1x16x256xf32>
      tpu.vector_store %arg9[%c0_31, %c0_32, %c0_33], %35 {strides = array<i32>} : memref<1x16x256xf32, #tpu.memory_space<vmem>>, vector<1x16x256xf32>,
    } else {
    }
    %c2_i32_0 = arith.constant 2 : i32
    %3 = arith.cmpi sge, %arg1, %c2_i32_0 : i32
    %4 = arith.extui %3 : i1 to i32
    %c0_i32_1 = arith.constant 0 : i32
    %5 = arith.cmpi ne, %4, %c0_i32_1 : i32
    scf.if %5 {
      %c0 = arith.constant 0 : index
      %c0_2 = arith.constant 0 : index
      %c0_3 = arith.constant 0 : index
      %6 = vector.load %arg8[%c0, %c0_2, %c0_3] : memref<1x16x256xf32, #tpu.memory_space<vmem>>, vector<1x16x256xf32>
      %7 = vector.shape_cast %6 : vector<1x16x256xf32> to vector<16x256xf32>
      %c0_4 = arith.constant 0 : index
      %c0_5 = arith.constant 0 : index
      %c0_6 = arith.constant 0 : index
      %8 = vector.load %arg9[%c0_4, %c0_5, %c0_6] : memref<1x16x256xf32, #tpu.memory_space<vmem>>, vector<1x16x256xf32>
      %9 = vector.shape_cast %8 : vector<1x16x256xf32> to vector<16x256xf32>
      %10 = vector.shape_cast %7 : vector<16x256xf32> to vector<1x16x256xf32>
      tpu.vector_store %arg9[%c0_4, %c0_5, %c0_6], %10 {strides = array<i32>} : memref<1x16x256xf32, #tpu.memory_space<vmem>>, vector<1x16x256xf32>,
    } else {
    }
    return
  }
  func.func @transform_0(%arg0: i32, %arg1: i32) -> (i32, i32, i32) {
    %c0_i32 = arith.constant 0 : i32
    %c0_i32_0 = arith.constant 0 : i32
    %c0_i32_1 = arith.constant 0 : i32
    return %arg0, %c0_i32, %c0_i32_0 : i32, i32, i32
  }
  func.func @transform_1(%arg0: i32, %arg1: i32) -> (i32, i32, i32) {
    %c1_i32 = arith.constant 1 : i32
    %0 = arith.minsi %arg1, %c1_i32 : i32
    %c0_i32 = arith.constant 0 : i32
    %c0_i32_0 = arith.constant 0 : i32
    %c0_i32_1 = arith.constant 0 : i32
    return %c0_i32, %0, %c0_i32_0 : i32, i32, i32
  }
  func.func @transform_2(%arg0: i32, %arg1: i32) -> (i32, i32, i32) {
    %c1_i32 = arith.constant 1 : i32
    %0 = arith.minsi %arg1, %c1_i32 : i32
    %c0_i32 = arith.constant 0 : i32
    %c0_i32_0 = arith.constant 0 : i32
    %c0_i32_1 = arith.constant 0 : i32
    return %c0_i32, %0, %c0_i32_0 : i32, i32, i32
  }
  func.func @transform_3(%arg0: i32, %arg1: i32) -> (i32, i32) {
    %c0_i32 = arith.constant 0 : i32
    %c0_i32_0 = arith.constant 0 : i32
    %c0_i32_1 = arith.constant 0 : i32
    return %c0_i32, %c0_i32_0 : i32, i32
  }
  func.func @transform_4(%arg0: i32, %arg1: i32) -> (i32, i32) {
    %c0_i32 = arith.constant 0 : i32
    %c0_i32_0 = arith.constant 0 : i32
    %c0_i32_1 = arith.constant 0 : i32
    return %c0_i32, %c0_i32_0 : i32, i32
  }
  func.func @transform_5(%arg0: i32, %arg1: i32) -> (i32, i32, i32) {
    %c1_i32 = arith.constant 1 : i32
    %0 = arith.minsi %arg1, %c1_i32 : i32
    %c0_i32 = arith.constant 0 : i32
    %c0_i32_0 = arith.constant 0 : i32
    return %arg0, %0, %c0_i32 : i32, i32, i32
  }
  func.func @transform_6(%arg0: i32, %arg1: i32) -> (i32, i32, i32) {
    %c2_i32 = arith.constant 2 : i32
    %0 = arith.subi %arg1, %c2_i32 : i32
    %c0_i32 = arith.constant 0 : i32
    %1 = arith.maxsi %0, %c0_i32 : i32
    %c0_i32_0 = arith.constant 0 : i32
    %c0_i32_1 = arith.constant 0 : i32
    return %arg0, %1, %c0_i32_0 : i32, i32, i32
  }
  func.func @transform_7(%arg0: i32, %arg1: i32) -> (i32, i32, i32) {
    %c0_i32 = arith.constant 0 : i32
    %c0_i32_0 = arith.constant 0 : i32
    return %arg0, %arg1, %c0_i32 : i32, i32, i32
  }
}

</mosaic_0001>

<llo_original>
// kernel: tpu_custom_call.1
$region0: #{tpu_custom_call.1}
  #allocation0 [shape = 'u32[]', space=smem, size = 0x4, offset = 0x4, fixed_abs, tag = 'smem constant byte address 0x4 - core index']
  #allocation1 [shape = 'u32[144,128]{1,0:T(1,128)}', space=vmem, size = 0x12000, scoped, tag = 'internal scratch']
  %s0 = inlined_call_operand.vmem [shape: f32[2,32,16], index: 0, kind: input, shape index: {}]
  %s1 = inlined_call_operand.vmem [shape: f32[2,32,32], index: 1, kind: input, shape index: {}]
  %s2 = inlined_call_operand.vmem [shape: f32[2,32,16], index: 2, kind: input, shape index: {}]
  %s3 = inlined_call_operand.vmem [shape: f32[16,256], index: 3, kind: input, shape index: {}]
  %s4 = inlined_call_operand.vmem [shape: f32[16,256], index: 4, kind: input, shape index: {}]
  %s5 = inlined_call_operand.vmem [shape: f32[2,32,1], index: 5, kind: input, shape index: {}]
  %s6 = inlined_call_operand.vmem [shape: f32[2,16,256], index: 6, kind: input, shape index: {}]
  %s7 = inlined_call_operand.vmem [shape: f32[2,38,256], index: 7, kind: output, shape index: {}]
  %s8 = sld [smem:[#allocation0]]
  $region171: #{tpu_custom_call.1} parent=0
    _
  %s10 = ssub.s32 1, %s8
  %s11 = scalar_select 0, %s10, %s8
  $region1: #{tpu_custom_call.1} parent=0
    #allocation2 [shape = 'u8[32768]{0}', space=vmem, size = 0x8000, scoped, tag = 'input window, operand 1']
    #allocation3 [shape = 'u8[32768]{0}', space=vmem, size = 0x8000, scoped, tag = 'input window, operand 2']
    #allocation4 [shape = 'u8[32768]{0}', space=vmem, size = 0x8000, scoped, tag = 'output window, operand 0']
    loop: start=0, step=1, limit=8
    $region2: #{tpu_custom_call.1} parent=1 // loop_pre_header
      _
    $region3: #{tpu_custom_call.1} parent=1 // loop_header
      %s13 = sphi 0, %s17
      %p14 = scmp.ge.s32.totalorder %s13, 8
      %s20 = sphi 0, %s32
      %s21 = sphi 0, %s28
      %s22 = sphi 0, %s20
      %s23 = sphi 0, %s21
      %s24 = sphi 0, %s22
      %s25 = sphi 0, %s23
      %s35 = sphi 0, %s37
      %s38 = sphi 0, %s35
      %s39 = sphi 0, %s38
      %s55 = sphi 0, %s39
      %s65 = sphi 0, %s67
      %s68 = sphi 0, %s65
      %s69 = sphi 0, %s68
      %s85 = sphi 0, %s69
      %s95 = sphi 0, %s97
      %s98 = sphi 0, %s95
      %s99 = sphi 0, %s98
      %s115 = sphi 0, %s99
      %s119 = sphi 0, %s119
      %s121 = sphi 0, %s119
      %s122 = sphi 0, %s121
      %s136 = sphi 0, %s122
      %s140 = sphi 0, %s140
      %s142 = sphi 0, %s140
      %s143 = sphi 0, %s142
      %s157 = sphi 0, %s143
      %s169 = sphi 0, %s171
      %s172 = sphi 0, %s169
      %s173 = sphi 0, %s172
      %s189 = sphi 0, %s173
      %s203 = sphi 0, %s205
      %s206 = sphi 0, %s203
      %s207 = sphi 0, %s206
      %s223 = sphi 0, %s207
      %s231 = sphi 0, %s233
      %s234 = sphi 0, %s231
      %s235 = sphi 0, %s234
      %s251 = sphi 0, %s235
    $region4: #{tpu_custom_call.1} parent=1 // loop_header_branch
      %16 = sbr.rel (%p14) target = $region8
    $region5: #{tpu_custom_call.1} parent=1 // loop_body
      %s18 = ssub.s32 %s13, 1
      %s19 = ssub.s32 %s13, 2
      %s26 = sadd.s32 1, %s21
      %p27 = scmp.ge.s32.totalorder %s26, 3
      %s28 = scalar_select %p27, 0, %s26
      %s29 = sadd.s32 1, %s20
      %s30 = scalar_select %p27, %s29, %s20
      %p31 = scmp.ge.s32.totalorder %s30, 2
      %s32 = scalar_select %p31, 0, %s30
      %s33 = ssub.s32 %s20, %s32
      %p34 = scmp.eq.s32.totalorder %s33, 0
      %s36 = sadd.s32 %s35, 1
      %s37 = scalar_select %p34, %s35, %s36
      %p40 = pneg %p34
      %p41 = scmp.eq.s32.totalorder %s13, 5
      %p42 = por %p40, %p41
      %p43 = scmp.ne.s32.totalorder %s35, %s38
      %p44 = scmp.eq.s32.totalorder %s13, 0
      %p45 = por %p43, %p44
      %p46 = scmp.ne.s32.totalorder %s35, %s38
      %p47 = scmp.eq.s32.totalorder %s18, 5
      %p48 = por %p46, %p47
      %p49 = scmp.ne.s32.totalorder %s38, %s39
      %p50 = scmp.eq.s32.totalorder %s18, 0
      %p51 = por %p49, %p50
      %p52 = scmp.ne.s32.totalorder %s38, %s39
      %p53 = scmp.eq.s32.totalorder %s19, 5
      %p54 = por %p52, %p53
      %p56 = scmp.ne.s32.totalorder %s39, %s55
      %p57 = scmp.eq.s32.totalorder %s19, 0
      %p58 = por %p56, %p57
      %p59 = scmp.lt.s32.totalorder %s21, 1
      %s60 = scalar_select %p59, %s21, 1
      %p61 = scmp.lt.s32.totalorder %s28, 1
      %s62 = scalar_select %p61, %s28, 1
      %s63 = ssub.s32 %s60, %s62
      %p64 = scmp.eq.s32.totalorder %s63, 0
      %s66 = sadd.s32 %s65, 1
      %s67 = scalar_select %p64, %s65, %s66
      %p70 = pneg %p64
      %p71 = scmp.eq.s32.totalorder %s13, 5
      %p72 = por %p70, %p71
      %p73 = scmp.ne.s32.totalorder %s65, %s68
      %p74 = scmp.eq.s32.totalorder %s13, 0
      %p75 = por %p73, %p74
      %p76 = scmp.ne.s32.totalorder %s65, %s68
      %p77 = scmp.eq.s32.totalorder %s18, 5
      %p78 = por %p76, %p77
      %p79 = scmp.ne.s32.totalorder %s68, %s69
      %p80 = scmp.eq.s32.totalorder %s18, 0
      %p81 = por %p79, %p80
      %p82 = scmp.ne.s32.totalorder %s68, %s69
      %p83 = scmp.eq.s32.totalorder %s19, 5
      %p84 = por %p82, %p83
      %p86 = scmp.ne.s32.totalorder %s69, %s85
      %p87 = scmp.eq.s32.totalorder %s19, 0
      %p88 = por %p86, %p87
      %p89 = scmp.lt.s32.totalorder %s21, 1
      %s90 = scalar_select %p89, %s21, 1
      %p91 = scmp.lt.s32.totalorder %s28, 1
      %s92 = scalar_select %p91, %s28, 1
      %s93 = ssub.s32 %s90, %s92
      %p94 = scmp.eq.s32.totalorder %s93, 0
      %s96 = sadd.s32 %s95, 1
      %s97 = scalar_select %p94, %s95, %s96
      %p100 = pneg %p94
      %p101 = scmp.eq.s32.totalorder %s13, 5
      %p102 = por %p100, %p101
      %p103 = scmp.ne.s32.totalorder %s95, %s98
      %p104 = scmp.eq.s32.totalorder %s13, 0
      %p105 = por %p103, %p104
      %p106 = scmp.ne.s32.totalorder %s95, %s98
      %p107 = scmp.eq.s32.totalorder %s18, 5
      %p108 = por %p106, %p107
      %p109 = scmp.ne.s32.totalorder %s98, %s99
      %p110 = scmp.eq.s32.totalorder %s18, 0
      %p111 = por %p109, %p110
      %p112 = scmp.ne.s32.totalorder %s98, %s99
      %p113 = scmp.eq.s32.totalorder %s19, 5
      %p114 = por %p112, %p113
      %p116 = scmp.ne.s32.totalorder %s99, %s115
      %p117 = scmp.eq.s32.totalorder %s19, 0
      %p118 = por %p116, %p117
      %s120 = sadd.s32 %s119, 1
      %p123 = scmp.eq.s32.totalorder %s13, 5
      %p124 = scmp.ne.s32.totalorder %s119, %s121
      %p125 = scmp.eq.s32.totalorder %s13, 0
      %p126 = por %p124, %p125
      %p127 = scmp.ne.s32.totalorder %s119, %s121
      %p128 = scmp.eq.s32.totalorder %s18, 5
      %p129 = por %p127, %p128
      %p130 = scmp.ne.s32.totalorder %s121, %s122
      %p131 = scmp.eq.s32.totalorder %s18, 0
      %p132 = por %p130, %p131
      %p133 = scmp.ne.s32.totalorder %s121, %s122
      %p134 = scmp.eq.s32.totalorder %s19, 5
      %p135 = por %p133, %p134
      %p137 = scmp.ne.s32.totalorder %s122, %s136
      %p138 = scmp.eq.s32.totalorder %s19, 0
      %p139 = por %p137, %p138
      %s141 = sadd.s32 %s140, 1
      %p144 = scmp.eq.s32.totalorder %s13, 5
      %p145 = scmp.ne.s32.totalorder %s140, %s142
      %p146 = scmp.eq.s32.totalorder %s13, 0
      %p147 = por %p145, %p146
      %p148 = scmp.ne.s32.totalorder %s140, %s142
      %p149 = scmp.eq.s32.totalorder %s18, 5
      %p150 = por %p148, %p149
      %p151 = scmp.ne.s32.totalorder %s142, %s143
      %p152 = scmp.eq.s32.totalorder %s18, 0
      %p153 = por %p151, %p152
      %p154 = scmp.ne.s32.totalorder %s142, %s143
      %p155 = scmp.eq.s32.totalorder %s19, 5
      %p156 = por %p154, %p155
      %p158 = scmp.ne.s32.totalorder %s143, %s157
      %p159 = scmp.eq.s32.totalorder %s19, 0
      %p160 = por %p158, %p159
      %p161 = scmp.lt.s32.totalorder %s21, 1
      %s162 = scalar_select %p161, %s21, 1
      %p163 = scmp.lt.s32.totalorder %s28, 1
      %s164 = scalar_select %p163, %s28, 1
      %s165 = ssub.s32 %s20, %s32
      %s166 = ssub.s32 %s162, %s164
      %s167 = sor.u32 %s165, %s166
      %p168 = scmp.eq.s32.totalorder %s167, 0
      %s170 = sadd.s32 %s169, 1
      %s171 = scalar_select %p168, %s169, %s170
      %p174 = pneg %p168
      %p175 = scmp.eq.s32.totalorder %s13, 5
      %p176 = por %p174, %p175
      %p177 = scmp.ne.s32.totalorder %s169, %s172
      %p178 = scmp.eq.s32.totalorder %s13, 0
      %p179 = por %p177, %p178
      %p180 = scmp.ne.s32.totalorder %s169, %s172
      %p181 = scmp.eq.s32.totalorder %s18, 5
      %p182 = por %p180, %p181
      %p183 = scmp.ne.s32.totalorder %s172, %s173
      %p184 = scmp.eq.s32.totalorder %s18, 0
      %p185 = por %p183, %p184
      %p186 = scmp.ne.s32.totalorder %s172, %s173
      %p187 = scmp.eq.s32.totalorder %s19, 5
      %p188 = por %p186, %p187
      %p190 = scmp.ne.s32.totalorder %s173, %s189
      %p191 = scmp.eq.s32.totalorder %s19, 0
      %p192 = por %p190, %p191
      %s193 = ssub.s32 %s21, 2
      %p194 = scmp.gt.s32.totalorder %s193, 0
      %s195 = scalar_select %p194, %s193, 0
      %s196 = ssub.s32 %s28, 2
      %p197 = scmp.gt.s32.totalorder %s196, 0
      %s198 = scalar_select %p197, %s196, 0
      %s199 = ssub.s32 %s20, %s32
      %s200 = ssub.s32 %s195, %s198
      %s201 = sor.u32 %s199, %s200
      %p202 = scmp.eq.s32.totalorder %s201, 0
      %s204 = sadd.s32 %s203, 1
      %s205 = scalar_select %p202, %s203, %s204
      %p208 = pneg %p202
      %p209 = scmp.eq.s32.totalorder %s13, 5
      %p210 = por %p208, %p209
      %p211 = scmp.ne.s32.totalorder %s203, %s206
      %p212 = scmp.eq.s32.totalorder %s13, 0
      %p213 = por %p211, %p212
      %p214 = scmp.ne.s32.totalorder %s203, %s206
      %p215 = scmp.eq.s32.totalorder %s18, 5
      %p216 = por %p214, %p215
      %p217 = scmp.ne.s32.totalorder %s206, %s207
      %p218 = scmp.eq.s32.totalorder %s18, 0
      %p219 = por %p217, %p218
      %p220 = scmp.ne.s32.totalorder %s206, %s207
      %p221 = scmp.eq.s32.totalorder %s19, 5
      %p222 = por %p220, %p221
      %p224 = scmp.ne.s32.totalorder %s207, %s223
      %p225 = scmp.eq.s32.totalorder %s19, 0
      %p226 = por %p224, %p225
      %s227 = ssub.s32 %s20, %s32
      %s228 = ssub.s32 %s21, %s28
      %s229 = sor.u32 %s227, %s228
      %p230 = scmp.eq.s32.totalorder %s229, 0
      %s232 = sadd.s32 %s231, 1
      %s233 = scalar_select %p230, %s231, %s232
      %p236 = pneg %p230
      %p237 = scmp.eq.s32.totalorder %s13, 5
      %p238 = por %p236, %p237
      %p239 = scmp.ne.s32.totalorder %s231, %s234
      %p240 = scmp.eq.s32.totalorder %s13, 0
      %p241 = por %p239, %p240
      %p242 = scmp.ne.s32.totalorder %s231, %s234
      %p243 = scmp.eq.s32.totalorder %s18, 5
      %p244 = por %p242, %p243
      %p245 = scmp.ne.s32.totalorder %s234, %s235
      %p246 = scmp.eq.s32.totalorder %s18, 0
      %p247 = por %p245, %p246
      %p248 = scmp.ne.s32.totalorder %s234, %s235
      %p249 = scmp.eq.s32.totalorder %s19, 5
      %p250 = por %p248, %p249
      %p252 = scmp.ne.s32.totalorder %s235, %s251
      %p253 = scmp.eq.s32.totalorder %s19, 0
      %p254 = por %p252, %p253
      %p255 = scmp.le.s32.totalorder 1, %s13
      %p256 = scmp.lt.s32.totalorder %s13, 7
      %p257 = pnand %p255, %p256
      %p258 = pneg %p257
      // Predicated region
      $region9: #{tpu_custom_call.1} parent=5 // pred_check
        _
      $region10: #{tpu_custom_call.1} parent=5 // pred_check_branch
        %260 = sbr.rel (%p257) target = $region12
      $region11: #{tpu_custom_call.1} parent=5 // pred_region
        %s261 = ssub.s32 %s13, 1
        // Predicated region
        $region13: #{tpu_custom_call.1} parent=11 // pred_check
          %p262 = pneg %p132
        $region14: #{tpu_custom_call.1} parent=11 // pred_check_branch
          %264 = sbr.rel (%p262) target = $region16
        $region15: #{tpu_custom_call.1} parent=11 // pred_region
          _
        $region16: #{tpu_custom_call.1} parent=11 // pred_fallthru
          _
        // Predicated region
        $region17: #{tpu_custom_call.1} parent=11 // pred_check
          %p265 = pneg %p153
        $region18: #{tpu_custom_call.1} parent=11 // pred_check_branch
          %267 = sbr.rel (%p265) target = $region20
        $region19: #{tpu_custom_call.1} parent=11 // pred_region
          _
        $region20: #{tpu_custom_call.1} parent=11 // pred_fallthru
          _
      $region12: #{tpu_custom_call.1} parent=5 // pred_fallthru
        _
      %p268 = scmp.lt.s32.totalorder %s13, 6
      // Predicated region
      $region21: #{tpu_custom_call.1} parent=5 // pred_check
        %p269 = pneg %p268
      $region22: #{tpu_custom_call.1} parent=5 // pred_check_branch
        %271 = sbr.rel (%p269) target = $region24
      $region23: #{tpu_custom_call.1} parent=5 // pred_region
        // Predicated region
        $region25: #{tpu_custom_call.1} parent=23 // pred_check
          %p272 = pneg %p45
        $region26: #{tpu_custom_call.1} parent=23 // pred_check_branch
          %274 = sbr.rel (%p272) target = $region28
        $region27: #{tpu_custom_call.1} parent=23 // pred_region
          %p275 = scmp.lt.s32.totalorder %s20, 1
          %s276 = scalar_select %p275, %s20, 1
          %s277 = smul.addr %s276, 4
          %s278 = smul.addr %s277, 8
          %s279 = scalar_lea.vmem %s0, %s278
        $region28: #{tpu_custom_call.1} parent=23 // pred_fallthru
          _
        // Predicated region
        $region29: #{tpu_custom_call.1} parent=23 // pred_check
          %p280 = pneg %p75
        $region30: #{tpu_custom_call.1} parent=23 // pred_check_branch
          %282 = sbr.rel (%p280) target = $region32
        $region31: #{tpu_custom_call.1} parent=23 // pred_region
          %s283 = sand.u32 %s65, 1
          %s284 = sand.u32 %s65, 1
          %s285 = smul.addr %s284, 32
          %s286 = scalar_lea.vmem [#allocation2], %s285
          %p287 = scmp.lt.s32.totalorder %s21, 1
          %s288 = scalar_select %p287, %s21, 1
          %s289 = smul.u32 2, %s288
          %s290 = smul.addr %s289, 8
          %s291 = scalar_lea.vmem %s1, %s290
          // Predicated region
          $region33: #{tpu_custom_call.1} parent=31 // pred_check
            _
          $region34: #{tpu_custom_call.1} parent=31 // pred_check_branch
            %293 = sbr.rel (0) target = $region36
          $region35: #{tpu_custom_call.1} parent=31 // pred_region
            // Predicated region
            $region37: #{tpu_custom_call.1} parent=35 // pred_check
              _
            $region38: #{tpu_custom_call.1} parent=35 // pred_check_branch
              %295 = sbr.rel (0) target = $region40
            $region39: #{tpu_custom_call.1} parent=35 // pred_region
              // Predicated region
              $region52: #{tpu_custom_call.1} parent=39 // pred_check
                _
              $region53: #{tpu_custom_call.1} parent=39 // pred_check_branch
                %317 = sbr.rel (0) target = $region55
              $region54: #{tpu_custom_call.1} parent=39 // pred_region
                loop: start=0, step=1, limit=1
                $region56: #{tpu_custom_call.1} parent=54 // loop_pre_header
                  _
                $region57: #{tpu_custom_call.1} parent=54 // loop_header
                  %s319 = sphi 0, %s323
                  %p320 = scmp.ge.s32.totalorder %s319, 1
                  %s324 = sphi %s291, %s291
                  %s325 = sphi %s286, %s286
                $region58: #{tpu_custom_call.1} parent=54 // loop_header_branch
                  %322 = sbr.rel (%p320) target = $region62
                $region59: #{tpu_custom_call.1} parent=54 // loop_body
                  %v326 = vld [vmem:[%s324] sm:$0xff]
                  %327 = vst [vmem:[%s325] sm:$0xff] %v326
                  %v328 = vld [vmem:[%s324 + $0x8] sm:$0xff]
                  %329 = vst [vmem:[%s325 + $0x8] sm:$0xff] %v328
                  %v330 = vld [vmem:[%s324 + $0x20] sm:$0xff]
                  %331 = vst [vmem:[%s325 + $0x10] sm:$0xff] %v330
                  %v332 = vld [vmem:[%s324 + $0x28] sm:$0xff]
                  %333 = vst [vmem:[%s325 + $0x18] sm:$0xff] %v332
                $region60: #{tpu_custom_call.1} parent=54 // loop_footer
                  %s323 = sadd.s32 1, %s319
                $region61: #{tpu_custom_call.1} parent=54 // loop_footer_branch
                  %318 = sbr.rel target = $region57
                $region62: #{tpu_custom_call.1} parent=54 // loop_exit
                  _
              $region55: #{tpu_custom_call.1} parent=39 // pred_fallthru
                _
              // Predicated region
              $region63: #{tpu_custom_call.1} parent=39 // pred_check
                _
              $region64: #{tpu_custom_call.1} parent=39 // pred_check_branch
                %335 = sbr.rel target = $region66
              $region65: #{tpu_custom_call.1} parent=39 // pred_region
                _
              $region66: #{tpu_custom_call.1} parent=39 // pred_fallthru
                _
            $region40: #{tpu_custom_call.1} parent=35 // pred_fallthru
              _
            // Predicated region
            $region41: #{tpu_custom_call.1} parent=35 // pred_check
              _
            $region42: #{tpu_custom_call.1} parent=35 // pred_check_branch
              %297 = sbr.rel target = $region44
            $region43: #{tpu_custom_call.1} parent=35 // pred_region
              %s299 = ssub.s32 256, 1
              loop: start=0, step=1, limit=1
              $region45: #{tpu_custom_call.1} parent=43 // loop_pre_header
                _
              $region46: #{tpu_custom_call.1} parent=43 // loop_header
                %s301 = sphi 0, %s305
                %p302 = scmp.ge.s32.totalorder %s301, 1
                %s306 = sphi %s291, %s291
                %s307 = sphi %s286, %s286
              $region47: #{tpu_custom_call.1} parent=43 // loop_header_branch
                %304 = sbr.rel (%p302) target = $region51
              $region48: #{tpu_custom_call.1} parent=43 // loop_body
                %v308 = vld [vmem:[%s306] sm:%s299]
                %309 = vst [vmem:[%s307] sm:%s299] %v308
                %v310 = vld [vmem:[%s306 + $0x8] sm:%s299]
                %311 = vst [vmem:[%s307 + $0x8] sm:%s299] %v310
                %v312 = vld [vmem:[%s306 + $0x20] sm:%s299]
                %313 = vst [vmem:[%s307 + $0x10] sm:%s299] %v312
                %v314 = vld [vmem:[%s306 + $0x28] sm:%s299]
                %315 = vst [vmem:[%s307 + $0x18] sm:%s299] %v314
              $region49: #{tpu_custom_call.1} parent=43 // loop_footer
                %s305 = sadd.s32 1, %s301
              $region50: #{tpu_custom_call.1} parent=43 // loop_footer_branch
                %300 = sbr.rel target = $region46
              $region51: #{tpu_custom_call.1} parent=43 // loop_exit
                _
            $region44: #{tpu_custom_call.1} parent=35 // pred_fallthru
              _
          $region36: #{tpu_custom_call.1} parent=31 // pred_fallthru
            _
          %336 = vnop
        $region32: #{tpu_custom_call.1} parent=23 // pred_fallthru
          _
        // Predicated region
        $region67: #{tpu_custom_call.1} parent=23 // pred_check
          %p337 = pneg %p105
        $region68: #{tpu_custom_call.1} parent=23 // pred_check_branch
          %339 = sbr.rel (%p337) target = $region70
        $region69: #{tpu_custom_call.1} parent=23 // pred_region
          %s340 = sand.u32 %s95, 1
          %s341 = sand.u32 %s95, 1
          %s342 = smul.addr %s341, 32
          %s343 = scalar_lea.vmem [#allocation3], %s342
          %p344 = scmp.lt.s32.totalorder %s21, 1
          %s345 = scalar_select %p344, %s21, 1
          %s346 = smul.u32 2, %s345
          %s347 = smul.addr %s346, 8
          %s348 = scalar_lea.vmem %s2, %s347
          // Predicated region
          $region71: #{tpu_custom_call.1} parent=69 // pred_check
            _
          $region72: #{tpu_custom_call.1} parent=69 // pred_check_branch
            %350 = sbr.rel (0) target = $region74
          $region73: #{tpu_custom_call.1} parent=69 // pred_region
            // Predicated region
            $region75: #{tpu_custom_call.1} parent=73 // pred_check
              _
            $region76: #{tpu_custom_call.1} parent=73 // pred_check_branch
              %352 = sbr.rel (0) target = $region78
            $region77: #{tpu_custom_call.1} parent=73 // pred_region
              // Predicated region
              $region90: #{tpu_custom_call.1} parent=77 // pred_check
                _
              $region91: #{tpu_custom_call.1} parent=77 // pred_check_branch
                %374 = sbr.rel (0) target = $region93
              $region92: #{tpu_custom_call.1} parent=77 // pred_region
                loop: start=0, step=1, limit=1
                $region94: #{tpu_custom_call.1} parent=92 // loop_pre_header
                  _
                $region95: #{tpu_custom_call.1} parent=92 // loop_header
                  %s376 = sphi 0, %s380
                  %p377 = scmp.ge.s32.totalorder %s376, 1
                  %s381 = sphi %s348, %s348
                  %s382 = sphi %s343, %s343
                $region96: #{tpu_custom_call.1} parent=92 // loop_header_branch
                  %379 = sbr.rel (%p377) target = $region100
                $region97: #{tpu_custom_call.1} parent=92 // loop_body
                  %v383 = vld [vmem:[%s381] sm:$0xff]
                  %384 = vst [vmem:[%s382] sm:$0xff] %v383
                  %v385 = vld [vmem:[%s381 + $0x8] sm:$0xff]
                  %386 = vst [vmem:[%s382 + $0x8] sm:$0xff] %v385
                  %v387 = vld [vmem:[%s381 + $0x20] sm:$0xff]
                  %388 = vst [vmem:[%s382 + $0x10] sm:$0xff] %v387
                  %v389 = vld [vmem:[%s381 + $0x28] sm:$0xff]
                  %390 = vst [vmem:[%s382 + $0x18] sm:$0xff] %v389
                $region98: #{tpu_custom_call.1} parent=92 // loop_footer
                  %s380 = sadd.s32 1, %s376
                $region99: #{tpu_custom_call.1} parent=92 // loop_footer_branch
                  %375 = sbr.rel target = $region95
                $region100: #{tpu_custom_call.1} parent=92 // loop_exit
                  _
              $region93: #{tpu_custom_call.1} parent=77 // pred_fallthru
                _
              // Predicated region
              $region101: #{tpu_custom_call.1} parent=77 // pred_check
                _
              $region102: #{tpu_custom_call.1} parent=77 // pred_check_branch
                %392 = sbr.rel target = $region104
              $region103: #{tpu_custom_call.1} parent=77 // pred_region
                _
              $region104: #{tpu_custom_call.1} parent=77 // pred_fallthru
                _
            $region78: #{tpu_custom_call.1} parent=73 // pred_fallthru
              _
            // Predicated region
            $region79: #{tpu_custom_call.1} parent=73 // pred_check
              _
            $region80: #{tpu_custom_call.1} parent=73 // pred_check_branch
              %354 = sbr.rel target = $region82
            $region81: #{tpu_custom_call.1} parent=73 // pred_region
              %s356 = ssub.s32 256, 1
              loop: start=0, step=1, limit=1
              $region83: #{tpu_custom_call.1} parent=81 // loop_pre_header
                _
              $region84: #{tpu_custom_call.1} parent=81 // loop_header
                %s358 = sphi 0, %s362
                %p359 = scmp.ge.s32.totalorder %s358, 1
                %s363 = sphi %s348, %s348
                %s364 = sphi %s343, %s343
              $region85: #{tpu_custom_call.1} parent=81 // loop_header_branch
                %361 = sbr.rel (%p359) target = $region89
              $region86: #{tpu_custom_call.1} parent=81 // loop_body
                %v365 = vld [vmem:[%s363] sm:%s356]
                %366 = vst [vmem:[%s364] sm:%s356] %v365
                %v367 = vld [vmem:[%s363 + $0x8] sm:%s356]
                %368 = vst [vmem:[%s364 + $0x8] sm:%s356] %v367
                %v369 = vld [vmem:[%s363 + $0x20] sm:%s356]
                %370 = vst [vmem:[%s364 + $0x10] sm:%s356] %v369
                %v371 = vld [vmem:[%s363 + $0x28] sm:%s356]
                %372 = vst [vmem:[%s364 + $0x18] sm:%s356] %v371
              $region87: #{tpu_custom_call.1} parent=81 // loop_footer
                %s362 = sadd.s32 1, %s358
              $region88: #{tpu_custom_call.1} parent=81 // loop_footer_branch
                %357 = sbr.rel target = $region84
              $region89: #{tpu_custom_call.1} parent=81 // loop_exit
                _
            $region82: #{tpu_custom_call.1} parent=73 // pred_fallthru
              _
          $region74: #{tpu_custom_call.1} parent=69 // pred_fallthru
            _
          %393 = vnop
        $region70: #{tpu_custom_call.1} parent=23 // pred_fallthru
          _
        // Predicated region
        $region105: #{tpu_custom_call.1} parent=23 // pred_check
          %p394 = pneg %p179
        $region106: #{tpu_custom_call.1} parent=23 // pred_check_branch
          %396 = sbr.rel (%p394) target = $region108
        $region107: #{tpu_custom_call.1} parent=23 // pred_region
          %p397 = scmp.lt.s32.totalorder %s21, 1
          %s398 = scalar_select %p397, %s21, 1
          %s399 = smul.u32 2, %s398
          %p400 = scmp.lt.s32.totalorder %s20, 1
          %s401 = scalar_select %p400, %s20, 1
          %p402 = scmp.lt.s32.totalorder %s399, 3
          %s403 = scalar_select %p402, %s399, 3
          %s404 = smul.addr %s401, 4
          %s405 = sadd.s32 %s403, %s404
          %s406 = smul.addr %s405, 8
          %s407 = scalar_lea.vmem %s5, %s406
          %p408 = scmp.lt.s32.totalorder %s21, 1
          %s409 = scalar_select %p408, %s21, 1
          %s410 = smul.u32 2, %s409
        $region108: #{tpu_custom_call.1} parent=23 // pred_fallthru
          _
        // Predicated region
        $region109: #{tpu_custom_call.1} parent=23 // pred_check
          %p411 = pneg %p213
        $region110: #{tpu_custom_call.1} parent=23 // pred_check_branch
          %413 = sbr.rel (%p411) target = $region112
        $region111: #{tpu_custom_call.1} parent=23 // pred_region
          %s414 = ssub.s32 %s21, 2
          %p415 = scmp.gt.s32.totalorder %s414, 0
          %s416 = scalar_select %p415, %s414, 0
          %s417 = smul.u32 2, %s416
          %p418 = scmp.lt.s32.totalorder %s20, 1
          %s419 = scalar_select %p418, %s20, 1
          %p420 = scmp.lt.s32.totalorder %s417, 1
          %s421 = scalar_select %p420, %s417, 1
          %s422 = smul.addr %s421, 2
          %s423 = smul.addr %s419, 4
          %s424 = sadd.s32 %s422, %s423
          %s425 = smul.addr %s424, 8
          %s426 = scalar_lea.vmem %s6, %s425
          %s427 = ssub.s32 %s21, 2
          %p428 = scmp.gt.s32.totalorder %s427, 0
          %s429 = scalar_select %p428, %s427, 0
          %s430 = smul.u32 2, %s429
        $region112: #{tpu_custom_call.1} parent=23 // pred_fallthru
          _
      $region24: #{tpu_custom_call.1} parent=5 // pred_fallthru
        _
      %p431 = scmp.le.s32.totalorder 1, %s13
      %p432 = scmp.lt.s32.totalorder %s13, 7
      %p433 = pnand %p431, %p432
      %p434 = pneg %p433
      // Predicated region
      $region113: #{tpu_custom_call.1} parent=5 // pred_check
        _
      $region114: #{tpu_custom_call.1} parent=5 // pred_check_branch
        %436 = sbr.rel (%p433) target = $region116
      $region115: #{tpu_custom_call.1} parent=5 // pred_region
        %s437 = ssub.s32 %s13, 1
        %s438 = sand.u32 %s68, 1
        %s439 = sand.u32 %s68, 1
        %s440 = smul.addr %s439, 32
        %s441 = scalar_lea.vmem [#allocation2], %s440
        // Predicated region
        $region117: #{tpu_custom_call.1} parent=115 // pred_check
          %p442 = pneg %p81
        $region118: #{tpu_custom_call.1} parent=115 // pred_check_branch
          %444 = sbr.rel (%p442) target = $region120
        $region119: #{tpu_custom_call.1} parent=115 // pred_region
          _
        $region120: #{tpu_custom_call.1} parent=115 // pred_fallthru
          _
        %s445 = sand.u32 %s98, 1
        %s446 = sand.u32 %s98, 1
        %s447 = smul.addr %s446, 32
        %s448 = scalar_lea.vmem [#allocation3], %s447
        // Predicated region
        $region121: #{tpu_custom_call.1} parent=115 // pred_check
          %p449 = pneg %p111
        $region122: #{tpu_custom_call.1} parent=115 // pred_check_branch
          %451 = sbr.rel (%p449) target = $region124
        $region123: #{tpu_custom_call.1} parent=115 // pred_region
          _
        $region124: #{tpu_custom_call.1} parent=115 // pred_fallthru
          _
        %p452 = scmp.lt.s32.totalorder %s22, 1
        %s453 = scalar_select %p452, %s22, 1
        %s454 = smul.addr %s453, 4
        %s455 = smul.addr %s454, 8
        %s456 = scalar_lea.vmem %s0, %s455
        %p457 = pneg %p51
        %p458 = pneg %p48
        %s459 = sand.u32 %s68, 1
        %s460 = sand.u32 %s68, 1
        %s461 = smul.addr %s460, 32
        %s462 = scalar_lea.vmem [#allocation2], %s461
        %p463 = pneg %p81
        %p464 = pneg %p78
        %s465 = sand.u32 %s98, 1
        %s466 = sand.u32 %s98, 1
        %s467 = smul.addr %s466, 32
        %s468 = scalar_lea.vmem [#allocation3], %s467
        %p469 = pneg %p111
        %p470 = pneg %p108
        %p471 = pneg %p132
        %p472 = pneg %p129
        %p473 = pneg %p153
        %p474 = pneg %p150
        %p475 = scmp.lt.s32.totalorder %s23, 1
        %s476 = scalar_select %p475, %s23, 1
        %s477 = smul.u32 2, %s476
        %p478 = scmp.lt.s32.totalorder %s22, 1
        %s479 = scalar_select %p478, %s22, 1
        %p480 = scmp.lt.s32.totalorder %s477, 3
        %s481 = scalar_select %p480, %s477, 3
        %s482 = smul.addr %s479, 4
        %s483 = sadd.s32 %s481, %s482
        %s484 = smul.addr %s483, 8
        %s485 = scalar_lea.vmem %s5, %s484
        %p486 = pneg %p185
        %p487 = pneg %p182
        %s488 = ssub.s32 %s23, 2
        %p489 = scmp.gt.s32.totalorder %s488, 0
        %s490 = scalar_select %p489, %s488, 0
        %s491 = smul.u32 2, %s490
        %p492 = scmp.lt.s32.totalorder %s22, 1
        %s493 = scalar_select %p492, %s22, 1
        %p494 = scmp.lt.s32.totalorder %s491, 1
        %s495 = scalar_select %p494, %s491, 1
        %s496 = smul.addr %s495, 2
        %s497 = smul.addr %s493, 4
        %s498 = sadd.s32 %s496, %s497
        %s499 = smul.addr %s498, 8
        %s500 = scalar_lea.vmem %s6, %s499
        %p501 = pneg %p219
        %p502 = pneg %p216
        %p503 = pneg %p247
        %p504 = pneg %p244
        %s505 = sand.u32 %s234, 1
        %s506 = sand.u32 %s234, 1
        %s507 = smul.addr %s506, 32
        %s508 = scalar_lea.vmem [#allocation4], %s507
        %p509 = scmp.lt.s32.totalorder %s22, 1
        %s510 = scalar_select %p509, %s22, 1
        %s511 = smul.addr %s510, 4
        %s512 = smul.addr %s511, 8
        %s513 = scalar_lea.vmem %s0, %s512
        %p514 = scmp.lt.s32.totalorder %s23, 1
        %s515 = scalar_select %p514, %s23, 1
        %s516 = smul.u32 2, %s515
        %p517 = scmp.lt.s32.totalorder %s23, 1
        %s518 = scalar_select %p517, %s23, 1
        %s519 = smul.u32 2, %s518
        %p520 = scmp.lt.s32.totalorder %s23, 1
        %s521 = scalar_select %p520, %s23, 1
        %s522 = smul.u32 2, %s521
        %p523 = scmp.lt.s32.totalorder %s22, 1
        %s524 = scalar_select %p523, %s22, 1
        %p525 = scmp.lt.s32.totalorder %s522, 3
        %s526 = scalar_select %p525, %s522, 3
        %s527 = smul.addr %s524, 4
        %s528 = sadd.s32 %s526, %s527
        %s529 = smul.addr %s528, 8
        %s530 = scalar_lea.vmem %s5, %s529
        %p531 = scmp.lt.s32.totalorder %s23, 1
        %s532 = scalar_select %p531, %s23, 1
        %s533 = smul.u32 2, %s532
        %s534 = ssub.s32 %s23, 2
        %p535 = scmp.gt.s32.totalorder %s534, 0
        %s536 = scalar_select %p535, %s534, 0
        %s537 = smul.u32 2, %s536
        %p538 = scmp.lt.s32.totalorder %s22, 1
        %s539 = scalar_select %p538, %s22, 1
        %p540 = scmp.lt.s32.totalorder %s537, 1
        %s541 = scalar_select %p540, %s537, 1
        %s542 = smul.addr %s541, 2
        %s543 = smul.addr %s539, 4
        %s544 = sadd.s32 %s542, %s543
        %s545 = smul.addr %s544, 8
        %s546 = scalar_lea.vmem %s6, %s545
        %s547 = ssub.s32 %s23, 2
        %p548 = scmp.gt.s32.totalorder %s547, 0
        %s549 = scalar_select %p548, %s547, 0
        %s550 = smul.u32 2, %s549
        %s551 = smul.u32 2, %s23
        %s552 = ssub.s32 5, %s551
        %p553 = scmp.lt.s32.totalorder %s552, 2
        %s554 = scalar_select %p553, %s552, 2
        %s555 = smul.u32 128, %s554
        %s556 = smul.u32 %s555, 2
        %p557 = scmp.lt.s32.totalorder %s23, 2
        // Predicated region
        $region125: #{tpu_custom_call.1} parent=115 // pred_check
          %p558 = pneg %p557
        $region126: #{tpu_custom_call.1} parent=115 // pred_check_branch
          %560 = sbr.rel (%p558) target = $region128
        $region127: #{tpu_custom_call.1} parent=115 // pred_region
          %v561 = vld [vmem:[%s513] sm:$0xff]
          %v562 = vld [vmem:[%s513 + $0x8] sm:$0xff]
          %v563 = vld [vmem:[%s513 + $0x10] sm:$0xff]
          %v564 = vld [vmem:[%s513 + $0x18] sm:$0xff]
          %v565 = vld [vmem:[%s441] sm:$0xff]
          %v566 = vld [vmem:[%s441 + $0x8] sm:$0xff]
          %vm567 = vcmask 261120
          %v569 = vsel %vm567, %v565, 0
          %v572 = vsel %vm567, %v566, 0
          %574 = vmatprep.subr.mxu0 0.0
          %575 = vmatpush1.msra.mxu0 0.0
          %576 = vmatprep.subr.mxu0 0.0
          %577 = vmatpush1.msra.mxu0 0.0
          %578 = vmatprep.subr.mxu0 0.0
          %579 = vmatpush1.msra.mxu0 0.0
          %580 = vmatprep.subr.mxu0 0.0
          %581 = vmatpush1.msra.mxu0 0.0
          %582 = vmatprep.subr.mxu0 0.0
          %583 = vmatpush1.msra.mxu0 0.0
          %584 = vmatprep.subr.mxu0 0.0
          %585 = vmatpush1.msra.mxu0 0.0
          %586 = vmatprep.subr.mxu0 0.0
          %587 = vmatpush1.msra.mxu0 0.0
          %588 = vmatprep.subr.mxu0 0.0
          %589 = vmatpush1.msra.mxu0 0.0
          %590 = vmatprep.subr.mxu0 0.0
          %591 = vmatpush1.msra.mxu0 0.0
          %592 = vmatprep.subr.mxu0 0.0
          %593 = vmatpush1.msra.mxu0 0.0
          %594 = vmatprep.subr.mxu0 0.0
          %595 = vmatpush1.msra.mxu0 0.0
          %596 = vmatprep.subr.mxu0 0.0
          %597 = vmatpush1.msra.mxu0 0.0
          %598 = vmatprep.subr.mxu0 0.0
          %599 = vmatpush1.msra.mxu0 %v564
          %600 = vmatprep.subr.mxu0 0.0
          %601 = vmatpush1.msra.mxu0 %v563
          %602 = vmatprep.subr.mxu0 0.0
          %603 = vmatpush1.msra.mxu0 %v562
          %604 = vmatprep.subr.mxu0 0.0
          %605 = vmatpush1.msra.mxu0 %v561
          %606 = vmatprep.subr.mxu0 0.0
          %607 = vmatpush2.msra.mxu0 0.0
          %608 = vmatprep.subr.mxu0 0.0
          %609 = vmatpush2.msra.mxu0 0.0
          %610 = vmatprep.subr.mxu0 0.0
          %611 = vmatpush2.msra.mxu0 0.0
          %612 = vmatprep.subr.mxu0 0.0
          %613 = vmatpush2.msra.mxu0 0.0
          %614 = vmatprep.subr.mxu0 0.0
          %615 = vmatpush2.msra.mxu0 0.0
          %616 = vmatprep.subr.mxu0 0.0
          %617 = vmatpush2.msra.mxu0 0.0
          %618 = vmatprep.subr.mxu0 0.0
          %619 = vmatpush2.msra.mxu0 0.0
          %620 = vmatprep.subr.mxu0 0.0
          %621 = vmatpush2.msra.mxu0 0.0
          %622 = vmatprep.subr.mxu0 0.0
          %623 = vmatpush2.msra.mxu0 0.0
          %624 = vmatprep.subr.mxu0 0.0
          %625 = vmatpush2.msra.mxu0 0.0
          %626 = vmatprep.subr.mxu0 0.0
          %627 = vmatpush2.msra.mxu0 0.0
          %628 = vmatprep.subr.mxu0 0.0
          %629 = vmatpush2.msra.mxu0 0.0
          %630 = vmatprep.subr.mxu0 0.0
          %631 = vmatpush2.msra.mxu0 0.0
          %632 = vmatprep.subr.mxu0 0.0
          %633 = vmatpush2.msra.mxu0 0.0
          %634 = vmatprep.subr.mxu0 0.0
          %635 = vmatpush2.msra.mxu0 0.0
          %636 = vmatprep.subr.mxu0 0.0
          %637 = vmatpush2.msra.mxu0 0.0
          %638 = vmatprep.mubr.f32.mxu0 0.0
          %639 = vmatmul.mubr.f32.gmra.mxu0 %v569
          %v640 = vpop.f32.mrf.mxu0
          %v641 = vadd.f32 0.0, %v640
          %v642 = vpop.f32.mrf.mxu0
          %643 = vmatprep.mubr.f32.mxu0 0.0
          %644 = vmatmul.mubr.f32.gmra.mxu0 %v572
          %v645 = vpop.f32.mrf.mxu0
          %v646 = vadd.f32 0.0, %v645
          %v647 = vpop.f32.mrf.mxu0
          %648 = vdwg.mxu0
          %s649 = scalar_lea.vmem %s441, 16 [#allocation2]
          %v650 = vld [vmem:[%s649] sm:$0xff]
          %v651 = vld [vmem:[%s649 + $0x8] sm:$0xff]
          %v653 = vsel %vm567, %v650, 0
          %v656 = vsel %vm567, %v651, 0
          %658 = vmatprep.subr.mxu0 0.0
          %659 = vmatpush1.msra.mxu0 0.0
          %660 = vmatprep.subr.mxu0 0.0
          %661 = vmatpush1.msra.mxu0 0.0
          %662 = vmatprep.subr.mxu0 0.0
          %663 = vmatpush1.msra.mxu0 0.0
          %664 = vmatprep.subr.mxu0 0.0
          %665 = vmatpush1.msra.mxu0 0.0
          %666 = vmatprep.subr.mxu0 0.0
          %667 = vmatpush1.msra.mxu0 0.0
          %668 = vmatprep.subr.mxu0 0.0
          %669 = vmatpush1.msra.mxu0 0.0
          %670 = vmatprep.subr.mxu0 0.0
          %671 = vmatpush1.msra.mxu0 0.0
          %672 = vmatprep.subr.mxu0 0.0
          %673 = vmatpush1.msra.mxu0 0.0
          %674 = vmatprep.subr.mxu0 0.0
          %675 = vmatpush1.msra.mxu0 0.0
          %676 = vmatprep.subr.mxu0 0.0
          %677 = vmatpush1.msra.mxu0 0.0
          %678 = vmatprep.subr.mxu0 0.0
          %679 = vmatpush1.msra.mxu0 0.0
          %680 = vmatprep.subr.mxu0 0.0
          %681 = vmatpush1.msra.mxu0 0.0
          %682 = vmatprep.subr.mxu0 0.0
          %683 = vmatpush1.msra.mxu0 %v564
          %684 = vmatprep.subr.mxu0 0.0
          %685 = vmatpush1.msra.mxu0 %v563
          %686 = vmatprep.subr.mxu0 0.0
          %687 = vmatpush1.msra.mxu0 %v562
          %688 = vmatprep.subr.mxu0 0.0
          %689 = vmatpush1.msra.mxu0 %v561
          %690 = vmatprep.subr.mxu0 0.0
          %691 = vmatpush2.msra.mxu0 0.0
          %692 = vmatprep.subr.mxu0 0.0
          %693 = vmatpush2.msra.mxu0 0.0
          %694 = vmatprep.subr.mxu0 0.0
          %695 = vmatpush2.msra.mxu0 0.0
          %696 = vmatprep.subr.mxu0 0.0
          %697 = vmatpush2.msra.mxu0 0.0
          %698 = vmatprep.subr.mxu0 0.0
          %699 = vmatpush2.msra.mxu0 0.0
          %700 = vmatprep.subr.mxu0 0.0
          %701 = vmatpush2.msra.mxu0 0.0
          %702 = vmatprep.subr.mxu0 0.0
          %703 = vmatpush2.msra.mxu0 0.0
          %704 = vmatprep.subr.mxu0 0.0
          %705 = vmatpush2.msra.mxu0 0.0
          %706 = vmatprep.subr.mxu0 0.0
          %707 = vmatpush2.msra.mxu0 0.0
          %708 = vmatprep.subr.mxu0 0.0
          %709 = vmatpush2.msra.mxu0 0.0
          %710 = vmatprep.subr.mxu0 0.0
          %711 = vmatpush2.msra.mxu0 0.0
          %712 = vmatprep.subr.mxu0 0.0
          %713 = vmatpush2.msra.mxu0 0.0
          %714 = vmatprep.subr.mxu0 0.0
          %715 = vmatpush2.msra.mxu0 0.0
          %716 = vmatprep.subr.mxu0 0.0
          %717 = vmatpush2.msra.mxu0 0.0
          %718 = vmatprep.subr.mxu0 0.0
          %719 = vmatpush2.msra.mxu0 0.0
          %720 = vmatprep.subr.mxu0 0.0
          %721 = vmatpush2.msra.mxu0 0.0
          %722 = vmatprep.mubr.f32.mxu0 0.0
          %723 = vmatmul.mubr.f32.gmra.mxu0 %v653
          %v724 = vpop.f32.mrf.mxu0
          %v725 = vadd.f32 0.0, %v724
          %v726 = vpop.f32.mrf.mxu0
          %727 = vmatprep.mubr.f32.mxu0 0.0
          %728 = vmatmul.mubr.f32.gmra.mxu0 %v656
          %v729 = vpop.f32.mrf.mxu0
          %v730 = vadd.f32 0.0, %v729
          %v731 = vpop.f32.mrf.mxu0
          %732 = vdwg.mxu0
          %v733 = vld [vmem:[%s3] sm:$0xff]
          %v734 = vld [vmem:[%s3 + $0x8] sm:$0xff]
          %v735 = vld [vmem:[%s3 + $0x10] sm:$0xff]
          %v736 = vld [vmem:[%s3 + $0x18] sm:$0xff]
          %vm737 = vcmask 130048
          %v739 = vsel %vm737, %v641, 0
          %v742 = vsel %vm737, %v646, 0
          %744 = vmatprep.subr.mxu0 0.0
          %745 = vmatpush1.msra.mxu0 0.0
          %746 = vmatprep.subr.mxu0 0.0
          %747 = vmatpush1.msra.mxu0 0.0
          %748 = vmatprep.subr.mxu0 0.0
          %749 = vmatpush1.msra.mxu0 0.0
          %750 = vmatprep.subr.mxu0 0.0
          %751 = vmatpush1.msra.mxu0 0.0
          %752 = vmatprep.subr.mxu0 0.0
          %753 = vmatpush1.msra.mxu0 0.0
          %754 = vmatprep.subr.mxu0 0.0
          %755 = vmatpush1.msra.mxu0 0.0
          %756 = vmatprep.subr.mxu0 0.0
          %757 = vmatpush1.msra.mxu0 0.0
          %758 = vmatprep.subr.mxu0 0.0
          %759 = vmatpush1.msra.mxu0 0.0
          %760 = vmatprep.subr.mxu0 0.0
          %761 = vmatpush1.msra.mxu0 0.0
          %762 = vmatprep.subr.mxu0 0.0
          %763 = vmatpush1.msra.mxu0 0.0
          %764 = vmatprep.subr.mxu0 0.0
          %765 = vmatpush1.msra.mxu0 0.0
          %766 = vmatprep.subr.mxu0 0.0
          %767 = vmatpush1.msra.mxu0 0.0
          %768 = vmatprep.subr.mxu0 0.0
          %769 = vmatpush1.msra.mxu0 0.0
          %770 = vmatprep.subr.mxu0 0.0
          %771 = vmatpush1.msra.mxu0 0.0
          %772 = vmatprep.subr.mxu0 %v736
          %773 = vmatpush1.msra.mxu0 %v735
          %774 = vmatprep.subr.mxu0 %v734
          %775 = vmatpush1.msra.mxu0 %v733
          %776 = vmatprep.subr.mxu0 0.0
          %777 = vmatpush2.msra.mxu0 0.0
          %778 = vmatprep.subr.mxu0 0.0
          %779 = vmatpush2.msra.mxu0 0.0
          %780 = vmatprep.subr.mxu0 0.0
          %781 = vmatpush2.msra.mxu0 0.0
          %782 = vmatprep.subr.mxu0 0.0
          %783 = vmatpush2.msra.mxu0 0.0
          %784 = vmatprep.subr.mxu0 0.0
          %785 = vmatpush2.msra.mxu0 0.0
          %786 = vmatprep.subr.mxu0 0.0
          %787 = vmatpush2.msra.mxu0 0.0
          %788 = vmatprep.subr.mxu0 0.0
          %789 = vmatpush2.msra.mxu0 0.0
          %790 = vmatprep.subr.mxu0 0.0
          %791 = vmatpush2.msra.mxu0 0.0
          %792 = vmatprep.subr.mxu0 0.0
          %793 = vmatpush2.msra.mxu0 0.0
          %794 = vmatprep.subr.mxu0 0.0
          %795 = vmatpush2.msra.mxu0 0.0
          %796 = vmatprep.subr.mxu0 0.0
          %797 = vmatpush2.msra.mxu0 0.0
          %798 = vmatprep.subr.mxu0 0.0
          %799 = vmatpush2.msra.mxu0 0.0
          %800 = vmatprep.subr.mxu0 0.0
          %801 = vmatpush2.msra.mxu0 0.0
          %802 = vmatprep.subr.mxu0 0.0
          %803 = vmatpush2.msra.mxu0 0.0
          %804 = vmatprep.subr.mxu0 0.0
          %805 = vmatpush2.msra.mxu0 0.0
          %806 = vmatprep.subr.mxu0 0.0
          %807 = vmatpush2.msra.mxu0 0.0
          %808 = vmatprep.mubr.f32.mxu0 0.0
          %809 = vmatmul.mubr.f32.gmra.mxu0 %v739
          %v810 = vpop.f32.mrf.mxu0
          %v811 = vadd.f32 0.0, %v810
          %v812 = vpop.f32.mrf.mxu0
          %v813 = vadd.f32 0.0, %v812
          %814 = vmatprep.mubr.f32.mxu0 0.0
          %815 = vmatmul.mubr.f32.gmra.mxu0 %v742
          %v816 = vpop.f32.mrf.mxu0
          %v817 = vadd.f32 0.0, %v816
          %v818 = vpop.f32.mrf.mxu0
          %v819 = vadd.f32 0.0, %v818
          %820 = vdwg.mxu0
          %v822 = vsel %vm737, %v725, 0
          %v825 = vsel %vm737, %v730, 0
          %827 = vmatprep.subr.mxu0 0.0
          %828 = vmatpush1.msra.mxu0 0.0
          %829 = vmatprep.subr.mxu0 0.0
          %830 = vmatpush1.msra.mxu0 0.0
          %831 = vmatprep.subr.mxu0 0.0
          %832 = vmatpush1.msra.mxu0 0.0
          %833 = vmatprep.subr.mxu0 0.0
          %834 = vmatpush1.msra.mxu0 0.0
          %835 = vmatprep.subr.mxu0 0.0
          %836 = vmatpush1.msra.mxu0 0.0
          %837 = vmatprep.subr.mxu0 0.0
          %838 = vmatpush1.msra.mxu0 0.0
          %839 = vmatprep.subr.mxu0 0.0
          %840 = vmatpush1.msra.mxu0 0.0
          %841 = vmatprep.subr.mxu0 0.0
          %842 = vmatpush1.msra.mxu0 0.0
          %843 = vmatprep.subr.mxu0 0.0
          %844 = vmatpush1.msra.mxu0 0.0
          %845 = vmatprep.subr.mxu0 0.0
          %846 = vmatpush1.msra.mxu0 0.0
          %847 = vmatprep.subr.mxu0 0.0
          %848 = vmatpush1.msra.mxu0 0.0
          %849 = vmatprep.subr.mxu0 0.0
          %850 = vmatpush1.msra.mxu0 0.0
          %851 = vmatprep.subr.mxu0 0.0
          %852 = vmatpush1.msra.mxu0 0.0
          %853 = vmatprep.subr.mxu0 0.0
          %854 = vmatpush1.msra.mxu0 0.0
          %855 = vmatprep.subr.mxu0 %v736
          %856 = vmatpush1.msra.mxu0 %v735
          %857 = vmatprep.subr.mxu0 %v734
          %858 = vmatpush1.msra.mxu0 %v733
          %859 = vmatprep.subr.mxu0 0.0
          %860 = vmatpush2.msra.mxu0 0.0
          %861 = vmatprep.subr.mxu0 0.0
          %862 = vmatpush2.msra.mxu0 0.0
          %863 = vmatprep.subr.mxu0 0.0
          %864 = vmatpush2.msra.mxu0 0.0
          %865 = vmatprep.subr.mxu0 0.0
          %866 = vmatpush2.msra.mxu0 0.0
          %867 = vmatprep.subr.mxu0 0.0
          %868 = vmatpush2.msra.mxu0 0.0
          %869 = vmatprep.subr.mxu0 0.0
          %870 = vmatpush2.msra.mxu0 0.0
          %871 = vmatprep.subr.mxu0 0.0
          %872 = vmatpush2.msra.mxu0 0.0
          %873 = vmatprep.subr.mxu0 0.0
          %874 = vmatpush2.msra.mxu0 0.0
          %875 = vmatprep.subr.mxu0 0.0
          %876 = vmatpush2.msra.mxu0 0.0
          %877 = vmatprep.subr.mxu0 0.0
          %878 = vmatpush2.msra.mxu0 0.0
          %879 = vmatprep.subr.mxu0 0.0
          %880 = vmatpush2.msra.mxu0 0.0
          %881 = vmatprep.subr.mxu0 0.0
          %882 = vmatpush2.msra.mxu0 0.0
          %883 = vmatprep.subr.mxu0 0.0
          %884 = vmatpush2.msra.mxu0 0.0
          %885 = vmatprep.subr.mxu0 0.0
          %886 = vmatpush2.msra.mxu0 0.0
          %887 = vmatprep.subr.mxu0 0.0
          %888 = vmatpush2.msra.mxu0 0.0
          %889 = vmatprep.subr.mxu0 0.0
          %890 = vmatpush2.msra.mxu0 0.0
          %891 = vmatprep.mubr.f32.mxu0 0.0
          %892 = vmatmul.mubr.f32.gmra.mxu0 %v822
          %v893 = vpop.f32.mrf.mxu0
          %v894 = vadd.f32 0.0, %v893
          %v895 = vpop.f32.mrf.mxu0
          %v896 = vadd.f32 0.0, %v895
          %897 = vmatprep.mubr.f32.mxu0 0.0
          %898 = vmatmul.mubr.f32.gmra.mxu0 %v825
          %v899 = vpop.f32.mrf.mxu0
          %v900 = vadd.f32 0.0, %v899
          %v901 = vpop.f32.mrf.mxu0
          %v902 = vadd.f32 0.0, %v901
          %903 = vdwg.mxu0
          %v904 = vld [vmem:[%s448] sm:$0xff]
          %v905 = vld [vmem:[%s448 + $0x8] sm:$0xff]
          %v906 = vld [vmem:[%s4] sm:$0xff]
          %v907 = vld [vmem:[%s4 + $0x8] sm:$0xff]
          %v908 = vld [vmem:[%s4 + $0x10] sm:$0xff]
          %v909 = vld [vmem:[%s4 + $0x18] sm:$0xff]
          %v911 = vsel %vm737, %v904, 0
          %v914 = vsel %vm737, %v905, 0
          %916 = vmatprep.subr.mxu0 0.0
          %917 = vmatpush1.msra.mxu0 0.0
          %918 = vmatprep.subr.mxu0 0.0
          %919 = vmatpush1.msra.mxu0 0.0
          %920 = vmatprep.subr.mxu0 0.0
          %921 = vmatpush1.msra.mxu0 0.0
          %922 = vmatprep.subr.mxu0 0.0
          %923 = vmatpush1.msra.mxu0 0.0
          %924 = vmatprep.subr.mxu0 0.0
          %925 = vmatpush1.msra.mxu0 0.0
          %926 = vmatprep.subr.mxu0 0.0
          %927 = vmatpush1.msra.mxu0 0.0
          %928 = vmatprep.subr.mxu0 0.0
          %929 = vmatpush1.msra.mxu0 0.0
          %930 = vmatprep.subr.mxu0 0.0
          %931 = vmatpush1.msra.mxu0 0.0
          %932 = vmatprep.subr.mxu0 0.0
          %933 = vmatpush1.msra.mxu0 0.0
          %934 = vmatprep.subr.mxu0 0.0
          %935 = vmatpush1.msra.mxu0 0.0
          %936 = vmatprep.subr.mxu0 0.0
          %937 = vmatpush1.msra.mxu0 0.0
          %938 = vmatprep.subr.mxu0 0.0
          %939 = vmatpush1.msra.mxu0 0.0
          %940 = vmatprep.subr.mxu0 0.0
          %941 = vmatpush1.msra.mxu0 0.0
          %942 = vmatprep.subr.mxu0 0.0
          %943 = vmatpush1.msra.mxu0 0.0
          %944 = vmatprep.subr.mxu0 %v909
          %945 = vmatpush1.msra.mxu0 %v908
          %946 = vmatprep.subr.mxu0 %v907
          %947 = vmatpush1.msra.mxu0 %v906
          %948 = vmatprep.subr.mxu0 0.0
          %949 = vmatpush2.msra.mxu0 0.0
          %950 = vmatprep.subr.mxu0 0.0
          %951 = vmatpush2.msra.mxu0 0.0
          %952 = vmatprep.subr.mxu0 0.0
          %953 = vmatpush2.msra.mxu0 0.0
          %954 = vmatprep.subr.mxu0 0.0
          %955 = vmatpush2.msra.mxu0 0.0
          %956 = vmatprep.subr.mxu0 0.0
          %957 = vmatpush2.msra.mxu0 0.0
          %958 = vmatprep.subr.mxu0 0.0
          %959 = vmatpush2.msra.mxu0 0.0
          %960 = vmatprep.subr.mxu0 0.0
          %961 = vmatpush2.msra.mxu0 0.0
          %962 = vmatprep.subr.mxu0 0.0
          %963 = vmatpush2.msra.mxu0 0.0
          %964 = vmatprep.subr.mxu0 0.0
          %965 = vmatpush2.msra.mxu0 0.0
          %966 = vmatprep.subr.mxu0 0.0
          %967 = vmatpush2.msra.mxu0 0.0
          %968 = vmatprep.subr.mxu0 0.0
          %969 = vmatpush2.msra.mxu0 0.0
          %970 = vmatprep.subr.mxu0 0.0
          %971 = vmatpush2.msra.mxu0 0.0
          %972 = vmatprep.subr.mxu0 0.0
          %973 = vmatpush2.msra.mxu0 0.0
          %974 = vmatprep.subr.mxu0 0.0
          %975 = vmatpush2.msra.mxu0 0.0
          %976 = vmatprep.subr.mxu0 0.0
          %977 = vmatpush2.msra.mxu0 0.0
          %978 = vmatprep.subr.mxu0 0.0
          %979 = vmatpush2.msra.mxu0 0.0
          %980 = vmatprep.mubr.f32.mxu0 0.0
          %981 = vmatmul.mubr.f32.gmra.mxu0 %v911
          %v982 = vpop.f32.mrf.mxu0
          %v983 = vadd.f32 0.0, %v982
          %v984 = vpop.f32.mrf.mxu0
          %v985 = vadd.f32 0.0, %v984
          %986 = vmatprep.mubr.f32.mxu0 0.0
          %987 = vmatmul.mubr.f32.gmra.mxu0 %v914
          %v988 = vpop.f32.mrf.mxu0
          %v989 = vadd.f32 0.0, %v988
          %v990 = vpop.f32.mrf.mxu0
          %v991 = vadd.f32 0.0, %v990
          %992 = vdwg.mxu0
          %s993 = scalar_lea.vmem %s448, 16 [#allocation3]
          %v994 = vld [vmem:[%s993] sm:$0xff]
          %v995 = vld [vmem:[%s993 + $0x8] sm:$0xff]
          %v997 = vsel %vm737, %v994, 0
          %v1000 = vsel %vm737, %v995, 0
          %1002 = vmatprep.subr.mxu0 0.0
          %1003 = vmatpush1.msra.mxu0 0.0
          %1004 = vmatprep.subr.mxu0 0.0
          %1005 = vmatpush1.msra.mxu0 0.0
          %1006 = vmatprep.subr.mxu0 0.0
          %1007 = vmatpush1.msra.mxu0 0.0
          %1008 = vmatprep.subr.mxu0 0.0
          %1009 = vmatpush1.msra.mxu0 0.0
          %1010 = vmatprep.subr.mxu0 0.0
          %1011 = vmatpush1.msra.mxu0 0.0
          %1012 = vmatprep.subr.mxu0 0.0
          %1013 = vmatpush1.msra.mxu0 0.0
          %1014 = vmatprep.subr.mxu0 0.0
          %1015 = vmatpush1.msra.mxu0 0.0
          %1016 = vmatprep.subr.mxu0 0.0
          %1017 = vmatpush1.msra.mxu0 0.0
          %1018 = vmatprep.subr.mxu0 0.0
          %1019 = vmatpush1.msra.mxu0 0.0
          %1020 = vmatprep.subr.mxu0 0.0
          %1021 = vmatpush1.msra.mxu0 0.0
          %1022 = vmatprep.subr.mxu0 0.0
          %1023 = vmatpush1.msra.mxu0 0.0
          %1024 = vmatprep.subr.mxu0 0.0
          %1025 = vmatpush1.msra.mxu0 0.0
          %1026 = vmatprep.subr.mxu0 0.0
          %1027 = vmatpush1.msra.mxu0 0.0
          %1028 = vmatprep.subr.mxu0 0.0
          %1029 = vmatpush1.msra.mxu0 0.0
          %1030 = vmatprep.subr.mxu0 %v909
          %1031 = vmatpush1.msra.mxu0 %v908
          %1032 = vmatprep.subr.mxu0 %v907
          %1033 = vmatpush1.msra.mxu0 %v906
          %1034 = vmatprep.subr.mxu0 0.0
          %1035 = vmatpush2.msra.mxu0 0.0
          %1036 = vmatprep.subr.mxu0 0.0
          %1037 = vmatpush2.msra.mxu0 0.0
          %1038 = vmatprep.subr.mxu0 0.0
          %1039 = vmatpush2.msra.mxu0 0.0
          %1040 = vmatprep.subr.mxu0 0.0
          %1041 = vmatpush2.msra.mxu0 0.0
          %1042 = vmatprep.subr.mxu0 0.0
          %1043 = vmatpush2.msra.mxu0 0.0
          %1044 = vmatprep.subr.mxu0 0.0
          %1045 = vmatpush2.msra.mxu0 0.0
          %1046 = vmatprep.subr.mxu0 0.0
          %1047 = vmatpush2.msra.mxu0 0.0
          %1048 = vmatprep.subr.mxu0 0.0
          %1049 = vmatpush2.msra.mxu0 0.0
          %1050 = vmatprep.subr.mxu0 0.0
          %1051 = vmatpush2.msra.mxu0 0.0
          %1052 = vmatprep.subr.mxu0 0.0
          %1053 = vmatpush2.msra.mxu0 0.0
          %1054 = vmatprep.subr.mxu0 0.0
          %1055 = vmatpush2.msra.mxu0 0.0
          %1056 = vmatprep.subr.mxu0 0.0
          %1057 = vmatpush2.msra.mxu0 0.0
          %1058 = vmatprep.subr.mxu0 0.0
          %1059 = vmatpush2.msra.mxu0 0.0
          %1060 = vmatprep.subr.mxu0 0.0
          %1061 = vmatpush2.msra.mxu0 0.0
          %1062 = vmatprep.subr.mxu0 0.0
          %1063 = vmatpush2.msra.mxu0 0.0
          %1064 = vmatprep.subr.mxu0 0.0
          %1065 = vmatpush2.msra.mxu0 0.0
          %1066 = vmatprep.mubr.f32.mxu0 0.0
          %1067 = vmatmul.mubr.f32.gmra.mxu0 %v997
          %v1068 = vpop.f32.mrf.mxu0
          %v1069 = vadd.f32 0.0, %v1068
          %v1070 = vpop.f32.mrf.mxu0
          %v1071 = vadd.f32 0.0, %v1070
          %1072 = vmatprep.mubr.f32.mxu0 0.0
          %1073 = vmatmul.mubr.f32.gmra.mxu0 %v1000
          %v1074 = vpop.f32.mrf.mxu0
          %v1075 = vadd.f32 0.0, %v1074
          %v1076 = vpop.f32.mrf.mxu0
          %v1077 = vadd.f32 0.0, %v1076
          %1078 = vdwg.mxu0
          %v1079 = vmul.f32 %v811, %v983
          %v1080 = vmul.f32 %v813, %v985
          %v1081 = vmul.f32 %v817, %v989
          %v1082 = vmul.f32 %v819, %v991
          %v1083 = vmul.f32 %v894, %v1069
          %v1084 = vmul.f32 %v896, %v1071
          %v1085 = vmul.f32 %v900, %v1075
          %v1086 = vmul.f32 %v902, %v1077
          %v1087 = vadd.f32 %v1079, %v1083
          %v1088 = vadd.f32 %v1080, %v1084
          %v1089 = vadd.f32 %v1081, %v1085
          %v1090 = vadd.f32 %v1082, %v1086
          %v1091 = vld [vmem:[%s530] sm:$0xff]
          %v1092 = vld [vmem:[%s530 + $0x8] sm:$0xff]
          %1094 = vset.pattern.permute.xlu0 0
          %1095 = vperm.xlu0 %1094, %v1091
          %v1096 = vpop.permute.xlu0 %1095
          %1099 = vset.pattern.permute.xlu0 0
          %1100 = vperm.xlu0 %1099, %v1092
          %v1101 = vpop.permute.xlu0 %1100
          %v1103 = vadd.f32 %v1087, %v1096
          %v1104 = vadd.f32 %v1088, %v1096
          %v1105 = vadd.f32 %v1089, %v1101
          %v1106 = vadd.f32 %v1090, %v1101
          %1107 = vst [vmem:[%s508] sm:$0xff] %v1103
          %1108 = vst [vmem:[%s508 + $0x8] sm:$0xff] %v1104
          %1109 = vst [vmem:[%s508 + $0x10] sm:$0xff] %v1105
          %1110 = vst [vmem:[%s508 + $0x18] sm:$0xff] %v1106
        $region128: #{tpu_custom_call.1} parent=115 // pred_fallthru
          _
        %p1111 = scmp.ge.s32.totalorder %s23, 2
        // Predicated region
        $region129: #{tpu_custom_call.1} parent=115 // pred_check
          %p1112 = pneg %p1111
        $region130: #{tpu_custom_call.1} parent=115 // pred_check_branch
          %1114 = sbr.rel (%p1112) target = $region132
        $region131: #{tpu_custom_call.1} parent=115 // pred_region
          %v1115 = vld [vmem:[%s546] sm:$0xff]
          %v1116 = vld [vmem:[%s546 + $0x8] sm:$0xff]
          %v1117 = vld [vmem:[%s546 + $0x10] sm:$0xff]
          %v1118 = vld [vmem:[%s546 + $0x18] sm:$0xff]
          %1119 = vst [vmem:[%s508] sm:$0xff] %v1115
          %1120 = vst [vmem:[%s508 + $0x8] sm:$0xff] %v1116
          %1121 = vst [vmem:[%s508 + $0x10] sm:$0xff] %v1117
          %1122 = vst [vmem:[%s508 + $0x18] sm:$0xff] %v1118
        $region132: #{tpu_custom_call.1} parent=115 // pred_fallthru
          _
        %s1123 = sand.u32 %s234, 1
        %s1124 = sand.u32 %s234, 1
        %s1125 = smul.addr %s1124, 32
        %s1126 = scalar_lea.vmem [#allocation4], %s1125
        // Predicated region
        $region133: #{tpu_custom_call.1} parent=115 // pred_check
          %p1127 = pneg %p244
        $region134: #{tpu_custom_call.1} parent=115 // pred_check_branch
          %1129 = sbr.rel (%p1127) target = $region136
        $region135: #{tpu_custom_call.1} parent=115 // pred_region
          %s1130 = smul.u32 2, %s23
          %s1131 = ssub.s32 5, %s1130
          %p1132 = scmp.lt.s32.totalorder %s1131, 2
          %s1133 = scalar_select %p1132, %s1131, 2
          %s1134 = smul.u32 128, %s1133
          %s1135 = smul.u32 %s1134, 2
          %p1136 = scmp.ne.s32.totalorder 0, %s1135
          %s1137 = smul.addr %s1130, 2
          %s1138 = smul.addr %s22, 10
          %s1139 = sadd.s32 %s1137, %s1138
          %s1140 = smul.addr %s1139, 8
          %s1141 = scalar_lea.vmem %s7, %s1140
          // Predicated region
          $region137: #{tpu_custom_call.1} parent=135 // pred_check
            %p1142 = pneg %p1136
          $region138: #{tpu_custom_call.1} parent=135 // pred_check_branch
            %1144 = sbr.rel (%p1142) target = $region140
          $region139: #{tpu_custom_call.1} parent=135 // pred_region
            // Predicated region
            $region141: #{tpu_custom_call.1} parent=139 // pred_check
              _
            $region142: #{tpu_custom_call.1} parent=139 // pred_check_branch
              %1146 = sbr.rel (0) target = $region144
            $region143: #{tpu_custom_call.1} parent=139 // pred_region
              %s1147 = sshrl.u32 %s1133, 1
              // While loop
              $region145: #{tpu_custom_call.1} parent=143 // loop_pre_header
                _
              $region146: #{tpu_custom_call.1} parent=143 // loop_header
                %s1149 = sphi 0, %s1151
                %p1150 = scmp.ge.s32.totalorder %s1149, %s1147
                %s1154 = sphi 0, %s1167
                %s1155 = sphi %s1126, %s1170
                %s1156 = sphi %s1141, %s1171
              $region147: #{tpu_custom_call.1} parent=143 // loop_header_branch
                %1153 = sbr.rel (%p1150) target = $region151
              $region148: #{tpu_custom_call.1} parent=143 // loop_body
                %v1157 = vld [vmem:[%s1155] sm:$0xff]
                %1158 = vst [vmem:[%s1156] sm:$0xff] %v1157
                %v1159 = vld [vmem:[%s1155 + $0x10] sm:$0xff]
                %1160 = vst [vmem:[%s1156 + $0x10] sm:$0xff] %v1159
                %v1161 = vld [vmem:[%s1155 + $0x8] sm:$0xff]
                %1162 = vst [vmem:[%s1156 + $0x8] sm:$0xff] %v1161
                %v1163 = vld [vmem:[%s1155 + $0x18] sm:$0xff]
                %1164 = vst [vmem:[%s1156 + $0x18] sm:$0xff] %v1163
                %s1165 = sadd.s32 1, %s1154
                %p1166 = scmp.ge.s32.totalorder %s1165, %s1147
                %s1167 = scalar_select %p1166, 0, %s1165
                %s1168 = smul.u32 %s1167, 32
                %s1169 = smul.u32 %s1167, 32
                %s1170 = scalar_lea.vmem %s1126, %s1168 [#allocation4]
                %s1171 = scalar_lea.vmem %s1141, %s1169
              $region149: #{tpu_custom_call.1} parent=143 // loop_footer
                %s1151 = sadd.s32 %s1149, 1
              $region150: #{tpu_custom_call.1} parent=143 // loop_footer_branch
                %1148 = sbr.rel target = $region146
              $region151: #{tpu_custom_call.1} parent=143 // loop_exit
                _
              %s1172 = sshrl.u32 %s1133, 1
              %s1173 = sand.u32 %s1133, 1
              %s1174 = smul.u32 %s1172, 2
              %s1175 = smul.u32 16, %s1174
              %s1176 = scalar_lea.vmem %s1126, %s1175 [#allocation4]
              %s1177 = smul.u32 16, %s1174
              %s1178 = scalar_lea.vmem %s1141, %s1177
              // While loop
              $region152: #{tpu_custom_call.1} parent=143 // loop_pre_header
                _
              $region153: #{tpu_custom_call.1} parent=143 // loop_header
                %s1180 = sphi 0, %s1182
                %p1181 = scmp.ge.s32.totalorder %s1180, %s1173
                %s1185 = sphi 0, %s1194
                %s1186 = sphi %s1176, %s1197
                %s1187 = sphi %s1178, %s1198
              $region154: #{tpu_custom_call.1} parent=143 // loop_header_branch
                %1184 = sbr.rel (%p1181) target = $region158
              $region155: #{tpu_custom_call.1} parent=143 // loop_body
                %v1188 = vld [vmem:[%s1186] sm:$0xff]
                %1189 = vst [vmem:[%s1187] sm:$0xff] %v1188
                %v1190 = vld [vmem:[%s1186 + $0x8] sm:$0xff]
                %1191 = vst [vmem:[%s1187 + $0x8] sm:$0xff] %v1190
                %s1192 = sadd.s32 1, %s1185
                %p1193 = scmp.ge.s32.totalorder %s1192, %s1173
                %s1194 = scalar_select %p1193, 0, %s1192
                %s1195 = smul.u32 %s1194, 16
                %s1196 = smul.u32 %s1194, 16
                %s1197 = scalar_lea.vmem %s1176, %s1195 [#allocation4]
                %s1198 = scalar_lea.vmem %s1178, %s1196
              $region156: #{tpu_custom_call.1} parent=143 // loop_footer
                %s1182 = sadd.s32 %s1180, 1
              $region157: #{tpu_custom_call.1} parent=143 // loop_footer_branch
                %1179 = sbr.rel target = $region153
              $region158: #{tpu_custom_call.1} parent=143 // loop_exit
                _
            $region144: #{tpu_custom_call.1} parent=139 // pred_fallthru
              _
            // Predicated region
            $region159: #{tpu_custom_call.1} parent=139 // pred_check
              _
            $region160: #{tpu_custom_call.1} parent=139 // pred_check_branch
              %1200 = sbr.rel target = $region162
            $region161: #{tpu_custom_call.1} parent=139 // pred_region
              _
            $region162: #{tpu_custom_call.1} parent=139 // pred_fallthru
              _
          $region140: #{tpu_custom_call.1} parent=135 // pred_fallthru
            _
          %1201 = vnop
        $region136: #{tpu_custom_call.1} parent=115 // pred_fallthru
          _
      $region116: #{tpu_custom_call.1} parent=5 // pred_fallthru
        _
      %p1202 = scmp.le.s32.totalorder 2, %s13
      // Predicated region
      $region163: #{tpu_custom_call.1} parent=5 // pred_check
        %p1203 = pneg %p1202
      $region164: #{tpu_custom_call.1} parent=5 // pred_check_branch
        %1205 = sbr.rel (%p1203) target = $region166
      $region165: #{tpu_custom_call.1} parent=5 // pred_region
        %s1206 = ssub.s32 %s13, 2
        // Predicated region
        $region167: #{tpu_custom_call.1} parent=165 // pred_check
          %p1207 = pneg %p250
        $region168: #{tpu_custom_call.1} parent=165 // pred_check_branch
          %1209 = sbr.rel (%p1207) target = $region170
        $region169: #{tpu_custom_call.1} parent=165 // pred_region
          %s1210 = sand.u32 %s235, 1
          %s1211 = sand.u32 %s235, 1
          %s1212 = smul.addr %s1211, 32
          %s1213 = scalar_lea.vmem [#allocation4], %s1212
        $region170: #{tpu_custom_call.1} parent=165 // pred_fallthru
          _
      $region166: #{tpu_custom_call.1} parent=5 // pred_fallthru
        _
    $region6: #{tpu_custom_call.1} parent=1 // loop_footer
      %s17 = sadd.s32 1, %s13
    $region7: #{tpu_custom_call.1} parent=1 // loop_footer_branch
      %12 = sbr.rel target = $region3
    $region8: #{tpu_custom_call.1} parent=1 // loop_exit
      _

</llo_original>
